<compile_context>
chip_gen: v6e
topology: v6e:2x2x1
jax: 0.10.0
libtpu: 0.0.40
codegen_flags: <defaults>
</compile_context>

<pallas_src>
import functools

import jax
import jax.numpy as jnp
from jax.experimental import pallas as pl
from jax.experimental.pallas import tpu as pltpu

DIM = 32           # embedding dim C
NUM_HEADS = 4      # head_dim = 8
MLP_RATIO = 4.0    # hidden = 128
INIT_VALUES = 1e-4
LN_EPS = 1e-5      # PyTorch nn.LayerNorm default


def _round_up(a, m):
    return (a + m - 1) // m * m


def _layernorm(z, w, b, eps=LN_EPS):
    mu = jnp.mean(z, axis=-1, keepdims=True)
    var = jnp.mean((z - mu) ** 2, axis=-1, keepdims=True)
    return (z - mu) * jax.lax.rsqrt(var + eps) * w + b


def _head_mask(dim, num_heads):
    # E[c, c'] = 1 if c and c' belong to the same head; block-diagonal 0/1.
    head_dim = dim // num_heads
    hi = jnp.arange(dim)[:, None] // head_dim
    hj = jnp.arange(dim)[None, :] // head_dim
    return (hi == hj).astype(jnp.float32)


def _block_kernel(xcls_ref, x_ref, vecs_ref, w_in_ref, fc1b_ref, fc2w_ref,
                  emat_ref, out_ref):
    TB, N, C = x_ref.shape
    hidden = fc1b_ref.shape[-1]

    # ---- packed parameters --------------------------------------------------
    n1w = vecs_ref[0:1, :]
    n1b = vecs_ref[1:2, :]
    n2w = vecs_ref[2:3, :]
    n2b = vecs_ref[3:4, :]
    bproj = vecs_ref[4:5, :]
    g1 = vecs_ref[5:6, :]
    g2 = vecs_ref[6:7, :]
    fc2b = vecs_ref[7:8, :]

    w_in = w_in_ref[...]                        # bf16 (C, 4C + hidden)
    w_kv = w_in[:, 0:2 * C]                     # [Wk | Wv]
    w_qkv = w_in[:, 0:3 * C]                    # [Wk | Wv | Wq*scale]
    w_proj = w_in[:, 3 * C:4 * C]
    w_fc1 = w_in[:, 4 * C:4 * C + hidden]
    e_mat = emat_ref[...]                       # f32 (C, C) block-diag 0/1

    xcls = xcls_ref[...]                        # f32 (TB, C)
    x2 = x_ref[...].reshape(TB * N, C)          # f32 (TB*N, C)

    # ---- norm1 (row-wise, so cls and tokens are normalised separately) ------
    cn = _layernorm(xcls, n1w, n1b)             # (TB, C)
    xn = _layernorm(x2, n1w, n1b)               # (TB*N, C)

    # ---- projections: q only for the cls row, k/v for all tokens ------------
    qkv_c = jnp.dot(cn.astype(jnp.bfloat16), w_qkv,
                    preferred_element_type=jnp.float32)      # (TB, 3C)
    kv_x = jnp.dot(xn.astype(jnp.bfloat16), w_kv,
                   preferred_element_type=jnp.float32)       # (TB*N, 2C)

    k_cls = qkv_c[:, 0:C]
    v_cls = qkv_c[:, C:2 * C]
    q = qkv_c[:, 2 * C:3 * C]                   # scale already folded into Wq
    k_x = kv_x[:, 0:C].reshape(TB, N, C)
    v_x = kv_x[:, C:2 * C].reshape(TB, N, C)

    # ---- per-head scores replicated over each head's C lanes via E ----------
    qk_x = q[:, None, :] * k_x                                       # (TB, N, C)
    s_x = jnp.dot(qk_x.reshape(TB * N, C), e_mat,
                  preferred_element_type=jnp.float32).reshape(TB, N, C)
    s_c = jnp.dot(q * k_cls, e_mat,
                  preferred_element_type=jnp.float32)                # (TB, C)

    # softmax over the N+1 tokens, 32 lanes wide; normalisation deferred.
    m = jnp.maximum(jnp.max(s_x, axis=1), s_c)                       # (TB, C)
    p_x = jnp.exp(s_x - m[:, None, :])                               # (TB, N, C)
    p_c = jnp.exp(s_c - m)                                           # (TB, C)
    denom = jnp.sum(p_x, axis=1) + p_c                               # (TB, C)
    num = jnp.sum(p_x * v_x, axis=1) + p_c * v_cls                   # (TB, C)
    ctx = num / denom                                                # exact

    attn_o = jnp.dot(ctx.astype(jnp.bfloat16), w_proj,
                     preferred_element_type=jnp.float32) + bproj

    # x_cls = x_cls + gamma_1 * attn(norm1(u))
    cls1 = xcls + g1 * attn_o

    # ---- norm2 + MLP ---------------------------------------------------------
    z = _layernorm(cls1, n2w, n2b)
    h1 = jnp.dot(z.astype(jnp.bfloat16), w_fc1,
                 preferred_element_type=jnp.float32) + fc1b_ref[...]
    # TODO(synk): PyTorch nn.GELU default is the exact erf GELU; tanh
    # approximation is used here for guaranteed Mosaic lowering (diff ~1e-3).
    h1 = jax.nn.gelu(h1, approximate=True)
    mlp_o = jnp.dot(h1.astype(jnp.bfloat16), fc2w_ref[...],
                    preferred_element_type=jnp.float32) + fc2b

    # x_cls = x_cls + gamma_2 * mlp(norm2(x_cls))
    out_ref[...] = cls1 + g2 * mlp_o


def pack_params(params, num_heads=NUM_HEADS):
    """One-time parameter packing (done at init, not per forward call)."""
    dim = params["wq"].shape[0]
    head_dim = dim // num_heads
    scale = head_dim ** -0.5
    vecs = jnp.concatenate(
        [params["norm1_w"], params["norm1_b"], params["norm2_w"], params["norm2_b"],
         params["bproj"], params["gamma1"], params["gamma2"], params["fc2_b"]],
        axis=0).astype(jnp.float32)                               # (8, C)
    # [Wk | Wv | Wq*scale | Wproj | fc1]; head scale folded into Wq columns.
    w_in = jnp.concatenate(
        [params["wk"], params["wv"], params["wq"] * scale,
         params["wproj"], params["fc1_w"]], axis=1).astype(jnp.bfloat16)
    return {
        "vecs": vecs,
        "w_in": w_in,                                             # (C, 4C+hidden) bf16
        "fc1_b": params["fc1_b"].astype(jnp.float32),             # (1, hidden)
        "fc2_w": params["fc2_w"].astype(jnp.bfloat16),            # (hidden, C)
        "e_mat": _head_mask(dim, num_heads),                      # (C, C) f32
    }


def layer_scale_block_class_attn(x, x_cls, packed):
    B, N, C = x.shape
    hidden = packed["fc1_b"].shape[-1]

    # ---- batch tiling: big tiles, but keep >=2 grid steps when B allows ------
    tb = min(1024, _round_up(max(B, 1), 8))
    if B > 8 and _round_up(B, tb) // tb < 2:
        # v7x megacore: give the "parallel" batch axis at least two grid steps.
        tb = max(8, _round_up((B + 1) // 2, 8))
    b_pad = _round_up(B, tb)

    xcls2 = x_cls.reshape(B, C)
    if b_pad != B:
        x = jnp.pad(x, ((0, b_pad - B), (0, 0), (0, 0)))
        xcls2 = jnp.pad(xcls2, ((0, b_pad - B), (0, 0)))

    def full(shape):
        # small parameter array resident (same block) for every grid step
        return pl.BlockSpec(shape, lambda b: (0,) * len(shape))

    out = pl.pallas_call(
        _block_kernel,
        out_shape=jax.ShapeDtypeStruct((b_pad, C), jnp.float32),
        grid=(b_pad // tb,),
        in_specs=[
            pl.BlockSpec((tb, C), lambda b: (b, 0)),          # x_cls tile
            pl.BlockSpec((tb, N, C), lambda b: (b, 0, 0)),    # x tile
            full((8, C)),                                     # packed vectors
            full((C, 4 * C + hidden)),                        # packed in-weights
            full((1, hidden)),                                # fc1 bias
            full((hidden, C)),                                # fc2 weight
            full((C, C)),                                     # head mask E
        ],
        out_specs=pl.BlockSpec((tb, C), lambda b: (b, 0)),
        compiler_params=pltpu.CompilerParams(
            dimension_semantics=("parallel",)),
    )(xcls2, x, packed["vecs"], packed["w_in"], packed["fc1_b"],
      packed["fc2_w"], packed["e_mat"])

    return out[:B].reshape(B, 1, C)


def init_params(key, dim=DIM, num_heads=NUM_HEADS, mlp_ratio=MLP_RATIO):
    hidden = int(dim * mlp_ratio)
    ks = jax.random.split(key, 8)
    s = 0.02
    return {
        # LayerNorm: weight=1, bias=0 (PyTorch default init)
        "norm1_w": jnp.ones((1, dim), jnp.float32),
        "norm1_b": jnp.zeros((1, dim), jnp.float32),
        "norm2_w": jnp.ones((1, dim), jnp.float32),
        "norm2_b": jnp.zeros((1, dim), jnp.float32),
        # ClassAttn linears (q/k/v bias-free, proj has bias), stored (in, out)
        "wq": s * jax.random.normal(ks[0], (dim, dim), jnp.float32),
        "wk": s * jax.random.normal(ks[1], (dim, dim), jnp.float32),
        "wv": s * jax.random.normal(ks[2], (dim, dim), jnp.float32),
        "wproj": s * jax.random.normal(ks[3], (dim, dim), jnp.float32),
        "bproj": s * jax.random.normal(ks[4], (1, dim), jnp.float32),
        # MLP
        "fc1_w": s * jax.random.normal(ks[5], (dim, hidden), jnp.float32),
        "fc1_b": jnp.zeros((1, hidden), jnp.float32),
        "fc2_w": s * jax.random.normal(ks[6], (hidden, dim), jnp.float32),
        "fc2_b": jnp.zeros((1, dim), jnp.float32),
        # layer-scale
        "gamma1": INIT_VALUES * jnp.ones((1, dim), jnp.float32),
        "gamma2": INIT_VALUES * jnp.ones((1, dim), jnp.float32),
    }


def _reference(x, x_cls, params, num_heads=NUM_HEADS):
    """Pure-JAX f32 reference matching the PyTorch module."""
    B, N, C = x.shape
    hd = C // num_heads
    u = jnp.concatenate([x_cls, x], axis=1)                       # (B, N+1, C)
    un = _layernorm(u, params["norm1_w"], params["norm1_b"])
    q = (un[:, 0] @ params["wq"]).reshape(B, 1, num_heads, hd).transpose(0, 2, 1, 3)
    k = (un @ params["wk"]).reshape(B, N + 1, num_heads, hd).transpose(0, 2, 1, 3)
    v = (un @ params["wv"]).reshape(B, N + 1, num_heads, hd).transpose(0, 2, 1, 3)
    attn = jax.nn.softmax((q * hd ** -0.5) @ k.transpose(0, 1, 3, 2), axis=-1)
    o = (attn @ v).transpose(0, 2, 1, 3).reshape(B, 1, C)
    o = o @ params["wproj"] + params["bproj"]
    cls1 = x_cls + params["gamma1"] * o
    z = _layernorm(cls1, params["norm2_w"], params["norm2_b"])
    h = jax.nn.gelu(z @ params["fc1_w"] + params["fc1_b"], approximate=True)
    mlp = h @ params["fc2_w"] + params["fc2_b"]
    return cls1 + params["gamma2"] * mlp


if __name__ == "__main__":
    B, N, C = 2, 8, DIM
    key = jax.random.PRNGKey(0)
    kx, kc, kp = jax.random.split(key, 3)

    x = jax.random.normal(kx, (B, N, C), jnp.float32)
    x_cls = jax.random.normal(kc, (B, 1, C), jnp.float32)
    params = init_params(kp)
    packed = pack_params(params)

    out = layer_scale_block_class_attn(x, x_cls, packed)
    jax.block_until_ready(out)
    assert out.shape == (B, 1, C)

    ref = _reference(x, x_cls, params)
    assert jnp.max(jnp.abs(out - ref)) < 2e-3, float(jnp.max(jnp.abs(out - ref)))
    print("KERNEL_OK")
</pallas_src>

<mosaic_0001>
module attributes {stable_mosaic.version = 11 : i64} {
  func.func @_block_kernel(%arg0: i32, %arg1: memref<8x32xf32, #tpu.memory_space<vmem>>, %arg2: memref<8x8x32xf32, #tpu.memory_space<vmem>>, %arg3: memref<8x32xf32, #tpu.memory_space<vmem>>, %arg4: memref<32x256xbf16, #tpu.memory_space<vmem>>, %arg5: memref<1x128xf32, #tpu.memory_space<vmem>>, %arg6: memref<128x32xbf16, #tpu.memory_space<vmem>>, %arg7: memref<32x32xf32, #tpu.memory_space<vmem>>, %arg8: memref<8x32xf32, #tpu.memory_space<vmem>>) attributes {dimension_semantics = [#tpu.dimension_semantics<parallel>], iteration_bounds = array<i64: 1>, scalar_prefetch = 0 : i64, scratch_operands = 0 : i64, tpu.core_type = #tpu.core_type<tc>, window_params = [{transform_indices = @transform_0, window_bounds = array<i64: 8, 32>}, {transform_indices = @transform_1, window_bounds = array<i64: 8, 8, 32>}, {pipeline_mode = #tpu.pipeline_mode<synchronous>, transform_indices = @transform_2, window_bounds = array<i64: 8, 32>}, {pipeline_mode = #tpu.pipeline_mode<synchronous>, transform_indices = @transform_3, window_bounds = array<i64: 32, 256>}, {pipeline_mode = #tpu.pipeline_mode<synchronous>, transform_indices = @transform_4, window_bounds = array<i64: 1, 128>}, {pipeline_mode = #tpu.pipeline_mode<synchronous>, transform_indices = @transform_5, window_bounds = array<i64: 128, 32>}, {pipeline_mode = #tpu.pipeline_mode<synchronous>, transform_indices = @transform_6, window_bounds = array<i64: 32, 32>}, {transform_indices = @transform_7, window_bounds = array<i64: 8, 32>}]} {
    %c0 = arith.constant 0 : index
    %c0_0 = arith.constant 0 : index
    %0 = vector.load %arg3[%c0, %c0_0] : memref<8x32xf32, #tpu.memory_space<vmem>>, vector<1x32xf32>
    %c1 = arith.constant 1 : index
    %c0_1 = arith.constant 0 : index
    %1 = vector.load %arg3[%c1, %c0_1] : memref<8x32xf32, #tpu.memory_space<vmem>>, vector<1x32xf32>
    %c2 = arith.constant 2 : index
    %c0_2 = arith.constant 0 : index
    %2 = vector.load %arg3[%c2, %c0_2] : memref<8x32xf32, #tpu.memory_space<vmem>>, vector<1x32xf32>
    %c3 = arith.constant 3 : index
    %c0_3 = arith.constant 0 : index
    %3 = vector.load %arg3[%c3, %c0_3] : memref<8x32xf32, #tpu.memory_space<vmem>>, vector<1x32xf32>
    %c4 = arith.constant 4 : index
    %c0_4 = arith.constant 0 : index
    %4 = vector.load %arg3[%c4, %c0_4] : memref<8x32xf32, #tpu.memory_space<vmem>>, vector<1x32xf32>
    %c5 = arith.constant 5 : index
    %c0_5 = arith.constant 0 : index
    %5 = vector.load %arg3[%c5, %c0_5] : memref<8x32xf32, #tpu.memory_space<vmem>>, vector<1x32xf32>
    %c6 = arith.constant 6 : index
    %c0_6 = arith.constant 0 : index
    %6 = vector.load %arg3[%c6, %c0_6] : memref<8x32xf32, #tpu.memory_space<vmem>>, vector<1x32xf32>
    %c7 = arith.constant 7 : index
    %c0_7 = arith.constant 0 : index
    %7 = vector.load %arg3[%c7, %c0_7] : memref<8x32xf32, #tpu.memory_space<vmem>>, vector<1x32xf32>
    %c0_8 = arith.constant 0 : index
    %c0_9 = arith.constant 0 : index
    %8 = vector.load %arg4[%c0_8, %c0_9] : memref<32x256xbf16, #tpu.memory_space<vmem>>, vector<32x256xbf16>
    %9 = vector.extract_strided_slice %8 {offsets = [0, 0], sizes = [32, 64], strides = [1, 1]} : vector<32x256xbf16> to vector<32x64xbf16>
    %10 = vector.extract_strided_slice %8 {offsets = [0, 0], sizes = [32, 96], strides = [1, 1]} : vector<32x256xbf16> to vector<32x96xbf16>
    %11 = vector.extract_strided_slice %8 {offsets = [0, 96], sizes = [32, 32], strides = [1, 1]} : vector<32x256xbf16> to vector<32x32xbf16>
    %12 = vector.extract_strided_slice %8 {offsets = [0, 128], sizes = [32, 128], strides = [1, 1]} : vector<32x256xbf16> to vector<32x128xbf16>
    %c0_10 = arith.constant 0 : index
    %c0_11 = arith.constant 0 : index
    %13 = vector.load %arg7[%c0_10, %c0_11] : memref<32x32xf32, #tpu.memory_space<vmem>>, vector<32x32xf32>
    %c0_12 = arith.constant 0 : index
    %c0_13 = arith.constant 0 : index
    %14 = vector.load %arg1[%c0_12, %c0_13] : memref<8x32xf32, #tpu.memory_space<vmem>>, vector<8x32xf32>
    %c0_14 = arith.constant 0 : index
    %c0_15 = arith.constant 0 : index
    %c0_16 = arith.constant 0 : index
    %15 = vector.load %arg2[%c0_14, %c0_15, %c0_16] : memref<8x8x32xf32, #tpu.memory_space<vmem>>, vector<8x8x32xf32>
    %16 = vector.shape_cast %15 : vector<8x8x32xf32> to vector<64x32xf32>
    %cst = arith.constant dense<0.000000e+00> : vector<8xf32>
    %17 = vector.multi_reduction <add>, %14, %cst [1] : vector<8x32xf32> to vector<8xf32>
    %18 = vector.shape_cast %17 : vector<8xf32> to vector<8x1xf32>
    %cst_17 = arith.constant 3.200000e+01 : f32
    %19 = vector.broadcast %cst_17 : f32 to vector<8x1xf32>
    %20 = arith.divf %18, %19 : vector<8x1xf32>
    %21 = vector.broadcast %20 : vector<8x1xf32> to vector<8x32xf32>
    %22 = arith.subf %14, %21 : vector<8x32xf32>
    %23 = arith.mulf %22, %22 : vector<8x32xf32>
    %cst_18 = arith.constant dense<0.000000e+00> : vector<8xf32>
    %24 = vector.multi_reduction <add>, %23, %cst_18 [1] : vector<8x32xf32> to vector<8xf32>
    %25 = vector.shape_cast %24 : vector<8xf32> to vector<8x1xf32>
    %cst_19 = arith.constant 3.200000e+01 : f32
    %26 = vector.broadcast %cst_19 : f32 to vector<8x1xf32>
    %27 = arith.divf %25, %26 : vector<8x1xf32>
    %28 = vector.broadcast %20 : vector<8x1xf32> to vector<8x32xf32>
    %29 = arith.subf %14, %28 : vector<8x32xf32>
    %cst_20 = arith.constant 9.99999974E-6 : f32
    %30 = vector.broadcast %cst_20 : f32 to vector<8x1xf32>
    %31 = arith.addf %27, %30 : vector<8x1xf32>
    %32 = math.rsqrt %31 : vector<8x1xf32>
    %33 = vector.broadcast %32 : vector<8x1xf32> to vector<8x32xf32>
    %34 = arith.mulf %29, %33 : vector<8x32xf32>
    %35 = vector.broadcast %0 : vector<1x32xf32> to vector<8x32xf32>
    %36 = arith.mulf %34, %35 : vector<8x32xf32>
    %37 = vector.broadcast %1 : vector<1x32xf32> to vector<8x32xf32>
    %38 = arith.addf %36, %37 : vector<8x32xf32>
    %cst_21 = arith.constant dense<0.000000e+00> : vector<64xf32>
    %39 = vector.multi_reduction <add>, %16, %cst_21 [1] : vector<64x32xf32> to vector<64xf32>
    %40 = vector.shape_cast %39 : vector<64xf32> to vector<64x1xf32>
    %cst_22 = arith.constant 3.200000e+01 : f32
    %41 = vector.broadcast %cst_22 : f32 to vector<64x1xf32>
    %42 = arith.divf %40, %41 : vector<64x1xf32>
    %43 = vector.broadcast %42 : vector<64x1xf32> to vector<64x32xf32>
    %44 = arith.subf %16, %43 : vector<64x32xf32>
    %45 = arith.mulf %44, %44 : vector<64x32xf32>
    %cst_23 = arith.constant dense<0.000000e+00> : vector<64xf32>
    %46 = vector.multi_reduction <add>, %45, %cst_23 [1] : vector<64x32xf32> to vector<64xf32>
    %47 = vector.shape_cast %46 : vector<64xf32> to vector<64x1xf32>
    %cst_24 = arith.constant 3.200000e+01 : f32
    %48 = vector.broadcast %cst_24 : f32 to vector<64x1xf32>
    %49 = arith.divf %47, %48 : vector<64x1xf32>
    %50 = vector.broadcast %42 : vector<64x1xf32> to vector<64x32xf32>
    %51 = arith.subf %16, %50 : vector<64x32xf32>
    %cst_25 = arith.constant 9.99999974E-6 : f32
    %52 = vector.broadcast %cst_25 : f32 to vector<64x1xf32>
    %53 = arith.addf %49, %52 : vector<64x1xf32>
    %54 = math.rsqrt %53 : vector<64x1xf32>
    %55 = vector.broadcast %54 : vector<64x1xf32> to vector<64x32xf32>
    %56 = arith.mulf %51, %55 : vector<64x32xf32>
    %57 = vector.broadcast %0 : vector<1x32xf32> to vector<64x32xf32>
    %58 = arith.mulf %56, %57 : vector<64x32xf32>
    %59 = vector.broadcast %1 : vector<1x32xf32> to vector<64x32xf32>
    %60 = arith.addf %58, %59 : vector<64x32xf32>
    %61 = arith.truncf %38 : vector<8x32xf32> to vector<8x32xbf16>
    %cst_26 = arith.constant dense<0.000000e+00> : vector<8x96xf32>
    %62 = tpu.matmul %61, %10, %cst_26 {dimension_numbers = #tpu.dot_dimension_numbers<[1], [0], [0], [1], [0, 0, 1, 1], [], []>} : vector<8x32xbf16>, vector<32x96xbf16>, vector<8x96xf32> -> vector<8x96xf32>
    %63 = arith.truncf %60 : vector<64x32xf32> to vector<64x32xbf16>
    %cst_27 = arith.constant dense<0.000000e+00> : vector<64x64xf32>
    %64 = tpu.matmul %63, %9, %cst_27 {dimension_numbers = #tpu.dot_dimension_numbers<[1], [0], [0], [1], [0, 0, 1, 1], [], []>} : vector<64x32xbf16>, vector<32x64xbf16>, vector<64x64xf32> -> vector<64x64xf32>
    %65 = vector.extract_strided_slice %62 {offsets = [0, 0], sizes = [8, 32], strides = [1, 1]} : vector<8x96xf32> to vector<8x32xf32>
    %66 = vector.extract_strided_slice %62 {offsets = [0, 32], sizes = [8, 32], strides = [1, 1]} : vector<8x96xf32> to vector<8x32xf32>
    %67 = vector.extract_strided_slice %62 {offsets = [0, 64], sizes = [8, 32], strides = [1, 1]} : vector<8x96xf32> to vector<8x32xf32>
    %68 = vector.extract_strided_slice %64 {offsets = [0, 0], sizes = [64, 32], strides = [1, 1]} : vector<64x64xf32> to vector<64x32xf32>
    %69 = vector.shape_cast %68 : vector<64x32xf32> to vector<8x8x32xf32>
    %70 = vector.extract_strided_slice %64 {offsets = [0, 32], sizes = [64, 32], strides = [1, 1]} : vector<64x64xf32> to vector<64x32xf32>
    %71 = vector.shape_cast %70 : vector<64x32xf32> to vector<8x8x32xf32>
    %72 = vector.shape_cast %67 : vector<8x32xf32> to vector<8x1x32xf32>
    %73 = vector.broadcast %72 : vector<8x1x32xf32> to vector<8x8x32xf32>
    %74 = arith.mulf %73, %69 : vector<8x8x32xf32>
    %75 = vector.shape_cast %74 : vector<8x8x32xf32> to vector<64x32xf32>
    %cst_28 = arith.constant dense<0.000000e+00> : vector<64x32xf32>
    %76 = tpu.matmul %75, %13, %cst_28 {dimension_numbers = #tpu.dot_dimension_numbers<[1], [0], [0], [1], [0, 0, 1, 1], [], []>} : vector<64x32xf32>, vector<32x32xf32>, vector<64x32xf32> -> vector<64x32xf32>
    %77 = vector.shape_cast %76 : vector<64x32xf32> to vector<8x8x32xf32>
    %78 = arith.mulf %67, %65 : vector<8x32xf32>
    %cst_29 = arith.constant dense<0.000000e+00> : vector<8x32xf32>
    %79 = tpu.matmul %78, %13, %cst_29 {dimension_numbers = #tpu.dot_dimension_numbers<[1], [0], [0], [1], [0, 0, 1, 1], [], []>} : vector<8x32xf32>, vector<32x32xf32>, vector<8x32xf32> -> vector<8x32xf32>
    %cst_30 = arith.constant dense<0xFF800000> : vector<8x32xf32>
    %80 = vector.multi_reduction <maximumf>, %77, %cst_30 [1] : vector<8x8x32xf32> to vector<8x32xf32>
    %81 = arith.maximumf %80, %79 : vector<8x32xf32>
    %82 = vector.shape_cast %81 : vector<8x32xf32> to vector<8x1x32xf32>
    %83 = vector.broadcast %82 : vector<8x1x32xf32> to vector<8x8x32xf32>
    %84 = arith.subf %77, %83 : vector<8x8x32xf32>
    %85 = math.exp %84 : vector<8x8x32xf32>
    %86 = arith.subf %79, %81 : vector<8x32xf32>
    %87 = math.exp %86 : vector<8x32xf32>
    %cst_31 = arith.constant dense<0.000000e+00> : vector<8x32xf32>
    %88 = vector.multi_reduction <add>, %85, %cst_31 [1] : vector<8x8x32xf32> to vector<8x32xf32>
    %89 = arith.addf %88, %87 : vector<8x32xf32>
    %90 = arith.mulf %85, %71 : vector<8x8x32xf32>
    %cst_32 = arith.constant dense<0.000000e+00> : vector<8x32xf32>
    %91 = vector.multi_reduction <add>, %90, %cst_32 [1] : vector<8x8x32xf32> to vector<8x32xf32>
    %92 = arith.mulf %87, %66 : vector<8x32xf32>
    %93 = arith.addf %91, %92 : vector<8x32xf32>
    %94 = arith.divf %93, %89 : vector<8x32xf32>
    %95 = arith.truncf %94 : vector<8x32xf32> to vector<8x32xbf16>
    %cst_33 = arith.constant dense<0.000000e+00> : vector<8x32xf32>
    %96 = tpu.matmul %95, %11, %cst_33 {dimension_numbers = #tpu.dot_dimension_numbers<[1], [0], [0], [1], [0, 0, 1, 1], [], []>} : vector<8x32xbf16>, vector<32x32xbf16>, vector<8x32xf32> -> vector<8x32xf32>
    %97 = vector.broadcast %4 : vector<1x32xf32> to vector<8x32xf32>
    %98 = arith.addf %96, %97 : vector<8x32xf32>
    %99 = vector.broadcast %5 : vector<1x32xf32> to vector<8x32xf32>
    %100 = arith.mulf %99, %98 : vector<8x32xf32>
    %101 = arith.addf %14, %100 : vector<8x32xf32>
    %cst_34 = arith.constant dense<0.000000e+00> : vector<8xf32>
    %102 = vector.multi_reduction <add>, %101, %cst_34 [1] : vector<8x32xf32> to vector<8xf32>
    %103 = vector.shape_cast %102 : vector<8xf32> to vector<8x1xf32>
    %cst_35 = arith.constant 3.200000e+01 : f32
    %104 = vector.broadcast %cst_35 : f32 to vector<8x1xf32>
    %105 = arith.divf %103, %104 : vector<8x1xf32>
    %106 = vector.broadcast %105 : vector<8x1xf32> to vector<8x32xf32>
    %107 = arith.subf %101, %106 : vector<8x32xf32>
    %108 = arith.mulf %107, %107 : vector<8x32xf32>
    %cst_36 = arith.constant dense<0.000000e+00> : vector<8xf32>
    %109 = vector.multi_reduction <add>, %108, %cst_36 [1] : vector<8x32xf32> to vector<8xf32>
    %110 = vector.shape_cast %109 : vector<8xf32> to vector<8x1xf32>
    %cst_37 = arith.constant 3.200000e+01 : f32
    %111 = vector.broadcast %cst_37 : f32 to vector<8x1xf32>
    %112 = arith.divf %110, %111 : vector<8x1xf32>
    %113 = vector.broadcast %105 : vector<8x1xf32> to vector<8x32xf32>
    %114 = arith.subf %101, %113 : vector<8x32xf32>
    %cst_38 = arith.constant 9.99999974E-6 : f32
    %115 = vector.broadcast %cst_38 : f32 to vector<8x1xf32>
    %116 = arith.addf %112, %115 : vector<8x1xf32>
    %117 = math.rsqrt %116 : vector<8x1xf32>
    %118 = vector.broadcast %117 : vector<8x1xf32> to vector<8x32xf32>
    %119 = arith.mulf %114, %118 : vector<8x32xf32>
    %120 = vector.broadcast %2 : vector<1x32xf32> to vector<8x32xf32>
    %121 = arith.mulf %119, %120 : vector<8x32xf32>
    %122 = vector.broadcast %3 : vector<1x32xf32> to vector<8x32xf32>
    %123 = arith.addf %121, %122 : vector<8x32xf32>
    %124 = arith.truncf %123 : vector<8x32xf32> to vector<8x32xbf16>
    %cst_39 = arith.constant dense<0.000000e+00> : vector<8x128xf32>
    %125 = tpu.matmul %124, %12, %cst_39 {dimension_numbers = #tpu.dot_dimension_numbers<[1], [0], [0], [1], [0, 0, 1, 1], [], []>} : vector<8x32xbf16>, vector<32x128xbf16>, vector<8x128xf32> -> vector<8x128xf32>
    %c0_40 = arith.constant 0 : index
    %c0_41 = arith.constant 0 : index
    %126 = vector.load %arg5[%c0_40, %c0_41] : memref<1x128xf32, #tpu.memory_space<vmem>>, vector<1x128xf32>
    %127 = vector.broadcast %126 : vector<1x128xf32> to vector<8x128xf32>
    %128 = arith.addf %125, %127 : vector<8x128xf32>
    %129 = arith.mulf %128, %128 : vector<8x128xf32>
    %130 = arith.mulf %128, %129 : vector<8x128xf32>
    %cst_42 = arith.constant 4.471500e-02 : f32
    %131 = vector.broadcast %cst_42 : f32 to vector<8x128xf32>
    %132 = arith.mulf %131, %130 : vector<8x128xf32>
    %133 = arith.addf %128, %132 : vector<8x128xf32>
    %cst_43 = arith.constant 0.797884583 : f32
    %134 = vector.broadcast %cst_43 : f32 to vector<8x128xf32>
    %135 = arith.mulf %134, %133 : vector<8x128xf32>
    %136 = math.tanh %135 : vector<8x128xf32>
    %cst_44 = arith.constant 1.000000e+00 : f32
    %137 = vector.broadcast %cst_44 : f32 to vector<8x128xf32>
    %138 = arith.addf %137, %136 : vector<8x128xf32>
    %cst_45 = arith.constant 5.000000e-01 : f32
    %139 = vector.broadcast %cst_45 : f32 to vector<8x128xf32>
    %140 = arith.mulf %139, %138 : vector<8x128xf32>
    %141 = arith.mulf %128, %140 : vector<8x128xf32>
    %142 = arith.truncf %141 : vector<8x128xf32> to vector<8x128xbf16>
    %c0_46 = arith.constant 0 : index
    %c0_47 = arith.constant 0 : index
    %143 = vector.load %arg6[%c0_46, %c0_47] : memref<128x32xbf16, #tpu.memory_space<vmem>>, vector<128x32xbf16>
    %cst_48 = arith.constant dense<0.000000e+00> : vector<8x32xf32>
    %144 = tpu.matmul %142, %143, %cst_48 {dimension_numbers = #tpu.dot_dimension_numbers<[1], [0], [0], [1], [0, 0, 1, 1], [], []>} : vector<8x128xbf16>, vector<128x32xbf16>, vector<8x32xf32> -> vector<8x32xf32>
    %145 = vector.broadcast %7 : vector<1x32xf32> to vector<8x32xf32>
    %146 = arith.addf %144, %145 : vector<8x32xf32>
    %147 = vector.broadcast %6 : vector<1x32xf32> to vector<8x32xf32>
    %148 = arith.mulf %147, %146 : vector<8x32xf32>
    %149 = arith.addf %101, %148 : vector<8x32xf32>
    %c0_49 = arith.constant 0 : index
    %c0_50 = arith.constant 0 : index
    %150 = vector.load %arg8[%c0_49, %c0_50] : memref<8x32xf32, #tpu.memory_space<vmem>>, vector<8x32xf32>
    tpu.vector_store %arg8[%c0_49, %c0_50], %149 {strides = array<i32>} : memref<8x32xf32, #tpu.memory_space<vmem>>, vector<8x32xf32>,
    return
  }
  func.func @transform_0(%arg0: i32) -> (i32, i32) {
    %c0_i32 = arith.constant 0 : i32
    %c0_i32_0 = arith.constant 0 : i32
    return %arg0, %c0_i32 : i32, i32
  }
  func.func @transform_1(%arg0: i32) -> (i32, i32, i32) {
    %c0_i32 = arith.constant 0 : i32
    %c0_i32_0 = arith.constant 0 : i32
    %c0_i32_1 = arith.constant 0 : i32
    return %arg0, %c0_i32, %c0_i32_0 : i32, i32, i32
  }
  func.func @transform_2(%arg0: i32) -> (i32, i32) {
    %c0_i32 = arith.constant 0 : i32
    %c0_i32_0 = arith.constant 0 : i32
    %c0_i32_1 = arith.constant 0 : i32
    return %c0_i32, %c0_i32_0 : i32, i32
  }
  func.func @transform_3(%arg0: i32) -> (i32, i32) {
    %c0_i32 = arith.constant 0 : i32
    %c0_i32_0 = arith.constant 0 : i32
    %c0_i32_1 = arith.constant 0 : i32
    return %c0_i32, %c0_i32_0 : i32, i32
  }
  func.func @transform_4(%arg0: i32) -> (i32, i32) {
    %c0_i32 = arith.constant 0 : i32
    %c0_i32_0 = arith.constant 0 : i32
    %c0_i32_1 = arith.constant 0 : i32
    return %c0_i32, %c0_i32_0 : i32, i32
  }
  func.func @transform_5(%arg0: i32) -> (i32, i32) {
    %c0_i32 = arith.constant 0 : i32
    %c0_i32_0 = arith.constant 0 : i32
    %c0_i32_1 = arith.constant 0 : i32
    return %c0_i32, %c0_i32_0 : i32, i32
  }
  func.func @transform_6(%arg0: i32) -> (i32, i32) {
    %c0_i32 = arith.constant 0 : i32
    %c0_i32_0 = arith.constant 0 : i32
    %c0_i32_1 = arith.constant 0 : i32
    return %c0_i32, %c0_i32_0 : i32, i32
  }
  func.func @transform_7(%arg0: i32) -> (i32, i32) {
    %c0_i32 = arith.constant 0 : i32
    %c0_i32_0 = arith.constant 0 : i32
    return %arg0, %c0_i32 : i32, i32
  }
}

</mosaic_0001>

<llo_original>
// kernel: tpu_custom_call.1
$region0: #{tpu_custom_call.1}
  #allocation0 [shape = 'u32[]', space=smem, size = 0x4, offset = 0x4, fixed_abs, tag = 'smem constant byte address 0x4 - core index']
  #allocation1 [shape = 'u32[144,128]{1,0:T(1,128)}', space=vmem, size = 0x12000, scoped, tag = 'internal scratch']
  %s0 = inlined_call_operand.vmem [shape: f32[8,32], index: 0, kind: input, shape index: {}]
  %s1 = inlined_call_operand.vmem [shape: f32[8,8,32], index: 1, kind: input, shape index: {}]
  %s2 = inlined_call_operand.vmem [shape: f32[8,32], index: 2, kind: input, shape index: {}]
  %s3 = inlined_call_operand.hbm [shape: bf16[32,256], index: 3, kind: input, shape index: {}]
  %s4 = inlined_call_operand.vmem [shape: f32[1,128], index: 4, kind: input, shape index: {}]
  %s5 = inlined_call_operand.vmem [shape: bf16[128,32], index: 5, kind: input, shape index: {}]
  %s6 = inlined_call_operand.hbm [shape: f32[32,32], index: 6, kind: input, shape index: {}]
  %s7 = inlined_call_operand.hbm [shape: f32[8,32], index: 7, kind: output, shape index: {}]
  %s8 = sld [smem:[#allocation0]]
  $region46: #{tpu_custom_call.1} parent=0
    _
  %s10 = ssub.s32 1, %s8
  %s11 = scalar_select 0, %s10, %s8
  $region1: #{tpu_custom_call.1} parent=0
    #allocation2 [shape = 'u8[16384]{0}', space=vmem, size = 0x4000, scoped, tag = 'input window, operand 3, single buffered']
    #allocation3 [shape = 's32[1]{0}', space=sflag, size = 0x4, scoped, tag = 'scoped memory for tpu_custom_call.1']
    #allocation4 [shape = 's32[1]{0}', space=sflag, size = 0x4, scoped, tag = 'scoped memory for tpu_custom_call.1']
    #allocation5 [shape = 'u8[16384]{0}', space=vmem, size = 0x4000, scoped, tag = 'input window, operand 6, single buffered']
    #allocation6 [shape = 's32[1]{0}', space=sflag, size = 0x4, scoped, tag = 'scoped memory for tpu_custom_call.1']
    #allocation7 [shape = 'u8[4096]{0}', space=vmem, size = 0x1000, scoped, tag = 'output window, operand 0, single buffered']
    %12 = vsyncpa [#allocation3], 0
    %13 = vsyncpa [#allocation6], 0
    %14 = vsyncpa [#allocation4], 0
    // Predicated region
    $region2: #{tpu_custom_call.1} parent=1 // pred_check
      _
    $region3: #{tpu_custom_call.1} parent=1 // pred_check_branch
      %16 = sbr.rel (0) target = $region5
    $region4: #{tpu_custom_call.1} parent=1 // pred_region
      _
    $region5: #{tpu_custom_call.1} parent=1 // pred_fallthru
      _
    // Predicated region
    $region6: #{tpu_custom_call.1} parent=1 // pred_check
      _
    $region7: #{tpu_custom_call.1} parent=1 // pred_check_branch
      %18 = sbr.rel (0) target = $region9
    $region8: #{tpu_custom_call.1} parent=1 // pred_region
      _
    $region9: #{tpu_custom_call.1} parent=1 // pred_fallthru
      _
    // Predicated region
    $region10: #{tpu_custom_call.1} parent=1 // pred_check
      _
    $region11: #{tpu_custom_call.1} parent=1 // pred_check_branch
      %20 = sbr.rel (0) target = $region13
    $region12: #{tpu_custom_call.1} parent=1 // pred_region
      _
    $region13: #{tpu_custom_call.1} parent=1 // pred_fallthru
      _
    // Predicated region
    $region14: #{tpu_custom_call.1} parent=1 // pred_check
      _
    $region15: #{tpu_custom_call.1} parent=1 // pred_check_branch
      %22 = sbr.rel (0) target = $region17
    $region16: #{tpu_custom_call.1} parent=1 // pred_region
      %s24 = ssub.s32 512, 512
      %25 = vsyncadd [#allocation3], %s24
      %s26 = sshll.u32 [#allocation2], 4
      %s27 = int_to_ptr.vmem [resolvable:$true] %s26
      %32 = dma.hbm_to_vmem [thread:$0]  %s3, 512, %s27, [#allocation3], 128, 128, 8
    $region17: #{tpu_custom_call.1} parent=1 // pred_fallthru
      _
    // Predicated region
    $region18: #{tpu_custom_call.1} parent=1 // pred_check
      _
    $region19: #{tpu_custom_call.1} parent=1 // pred_check_branch
      %34 = sbr.rel (0) target = $region21
    $region20: #{tpu_custom_call.1} parent=1 // pred_region
      _
    $region21: #{tpu_custom_call.1} parent=1 // pred_fallthru
      _
    // Predicated region
    $region22: #{tpu_custom_call.1} parent=1 // pred_check
      _
    $region23: #{tpu_custom_call.1} parent=1 // pred_check_branch
      %36 = sbr.rel (0) target = $region25
    $region24: #{tpu_custom_call.1} parent=1 // pred_region
      _
    $region25: #{tpu_custom_call.1} parent=1 // pred_fallthru
      _
    // Predicated region
    $region26: #{tpu_custom_call.1} parent=1 // pred_check
      _
    $region27: #{tpu_custom_call.1} parent=1 // pred_check_branch
      %38 = sbr.rel (0) target = $region29
    $region28: #{tpu_custom_call.1} parent=1 // pred_region
      %s40 = ssub.s32 512, 512
      %41 = vsyncadd [#allocation6], %s40
      %s42 = sshll.u32 [#allocation5], 4
      %s43 = int_to_ptr.vmem [resolvable:$true] %s42
      %48 = dma.hbm_to_vmem [thread:$0]  %s6, 512, %s43, [#allocation6], 128, 128, 8
    $region29: #{tpu_custom_call.1} parent=1 // pred_fallthru
      _
    // Predicated region
    $region30: #{tpu_custom_call.1} parent=1 // pred_check
      _
    $region31: #{tpu_custom_call.1} parent=1 // pred_check_branch
      %50 = sbr.rel (0) target = $region33
    $region32: #{tpu_custom_call.1} parent=1 // pred_region
      %51 = dma.done [#allocation3], 512
    $region33: #{tpu_custom_call.1} parent=1 // pred_fallthru
      _
    // Predicated region
    $region34: #{tpu_custom_call.1} parent=1 // pred_check
      _
    $region35: #{tpu_custom_call.1} parent=1 // pred_check_branch
      %53 = sbr.rel (0) target = $region37
    $region36: #{tpu_custom_call.1} parent=1 // pred_region
      %54 = dma.done [#allocation6], 512
    $region37: #{tpu_custom_call.1} parent=1 // pred_fallthru
      _
    %v56 = vld [vmem:[%s2] sm:$0x1]
    %v57 = vld [vmem:[%s2 + $0x1] sm:$0x1]
    %v58 = vld [vmem:[%s2 + $0x2] sm:$0x1]
    %v59 = vld [vmem:[%s2 + $0x3] sm:$0x1]
    %v60 = vld [vmem:[%s2 + $0x4] sm:$0x1]
    %v61 = vld [vmem:[%s2 + $0x5] sm:$0x1]
    %v62 = vld [vmem:[%s2 + $0x6] sm:$0x1]
    %v63 = vld [vmem:[%s2 + $0x7] sm:$0x1]
    %v64 = vld [vmem:[#allocation2] sm:$0xff]
    %v65 = vld [vmem:[#allocation2 + $0x8] sm:$0xff]
    %v66 = vld [vmem:[#allocation2 + $0x10] sm:$0xff]
    %v67 = vld [vmem:[#allocation2 + $0x18] sm:$0xff]
    %v68 = vld [vmem:[#allocation5] sm:$0xff]
    %v69 = vld [vmem:[#allocation5 + $0x8] sm:$0xff]
    %v70 = vld [vmem:[#allocation5 + $0x10] sm:$0xff]
    %v71 = vld [vmem:[#allocation5 + $0x18] sm:$0xff]
    %v72 = vld [vmem:[%s0] sm:$0xff]
    %v73 = vld [vmem:[%s1] sm:$0xff]
    %v74 = vld [vmem:[%s1 + $0x8] sm:$0xff]
    %v75 = vld [vmem:[%s1 + $0x10] sm:$0xff]
    %v76 = vld [vmem:[%s1 + $0x18] sm:$0xff]
    %v77 = vld [vmem:[%s1 + $0x20] sm:$0xff]
    %v78 = vld [vmem:[%s1 + $0x28] sm:$0xff]
    %v79 = vld [vmem:[%s1 + $0x30] sm:$0xff]
    %v80 = vld [vmem:[%s1 + $0x38] sm:$0xff]
    %vm81 = vcmask 261120
    %v82 = vsel %vm81, %v72, 0.0
    %83 = vadd.xlane.f32.xlu0 %v82
    %v84 = vpop.xlane.xlu0 %83
    %v85 = vrcp.pop 32.0
    %v86 = vmul.f32 %v84, %v85
    %v87 = vsub.f32 %v72, %v86
    %v88 = vmul.f32 %v87, %v87
    %v89 = vsel %vm81, %v88, 0.0
    %90 = vadd.xlane.f32.xlu0 %v89
    %v91 = vpop.xlane.xlu0 %90
    %v92 = vmul.f32 %v91, %v85
    %v93 = vadd.f32 %v92, 1e-05
    %v94 = vrsqrt.pop %v93
    %v95 = vmul.f32 %v87, %v94
    %v96 = vlaneseq
    %v97 = vshrl.u32 %v96, 7
    %v98 = vsub.s32 0, %v97
    %v99 = vrot.slane %v56, %v98
    %v100 = vmul.f32 %v95, %v99
    %v101 = vlaneseq
    %v102 = vshrl.u32 %v101, 7
    %v103 = vsub.s32 0, %v102
    %v104 = vrot.slane %v57, %v103
    %v105 = vadd.f32 %v100, %v104
    %v106 = vsel %vm81, %v73, 0.0
    %107 = vadd.xlane.f32.xlu0 %v106
    %v108 = vpop.xlane.xlu0 %107
    %v109 = vsel %vm81, %v74, 0.0
    %110 = vadd.xlane.f32.xlu0 %v109
    %v111 = vpop.xlane.xlu0 %110
    %v112 = vsel %vm81, %v75, 0.0
    %113 = vadd.xlane.f32.xlu0 %v112
    %v114 = vpop.xlane.xlu0 %113
    %v115 = vsel %vm81, %v76, 0.0
    %116 = vadd.xlane.f32.xlu0 %v115
    %v117 = vpop.xlane.xlu0 %116
    %v118 = vsel %vm81, %v77, 0.0
    %119 = vadd.xlane.f32.xlu0 %v118
    %v120 = vpop.xlane.xlu0 %119
    %v121 = vsel %vm81, %v78, 0.0
    %122 = vadd.xlane.f32.xlu0 %v121
    %v123 = vpop.xlane.xlu0 %122
    %v124 = vsel %vm81, %v79, 0.0
    %125 = vadd.xlane.f32.xlu0 %v124
    %v126 = vpop.xlane.xlu0 %125
    %v127 = vsel %vm81, %v80, 0.0
    %128 = vadd.xlane.f32.xlu0 %v127
    %v129 = vpop.xlane.xlu0 %128
    %v130 = vmul.f32 %v108, %v85
    %v131 = vmul.f32 %v111, %v85
    %v132 = vmul.f32 %v114, %v85
    %v133 = vmul.f32 %v117, %v85
    %v134 = vmul.f32 %v120, %v85
    %v135 = vmul.f32 %v123, %v85
    %v136 = vmul.f32 %v126, %v85
    %v137 = vmul.f32 %v129, %v85
    %v138 = vsub.f32 %v73, %v130
    %v139 = vsub.f32 %v74, %v131
    %v140 = vsub.f32 %v75, %v132
    %v141 = vsub.f32 %v76, %v133
    %v142 = vsub.f32 %v77, %v134
    %v143 = vsub.f32 %v78, %v135
    %v144 = vsub.f32 %v79, %v136
    %v145 = vsub.f32 %v80, %v137
    %v146 = vmul.f32 %v138, %v138
    %v147 = vmul.f32 %v139, %v139
    %v148 = vmul.f32 %v140, %v140
    %v149 = vmul.f32 %v141, %v141
    %v150 = vmul.f32 %v142, %v142
    %v151 = vmul.f32 %v143, %v143
    %v152 = vmul.f32 %v144, %v144
    %v153 = vmul.f32 %v145, %v145
    %v154 = vsel %vm81, %v146, 0.0
    %155 = vadd.xlane.f32.xlu0 %v154
    %v156 = vpop.xlane.xlu0 %155
    %v157 = vsel %vm81, %v147, 0.0
    %158 = vadd.xlane.f32.xlu0 %v157
    %v159 = vpop.xlane.xlu0 %158
    %v160 = vsel %vm81, %v148, 0.0
    %161 = vadd.xlane.f32.xlu0 %v160
    %v162 = vpop.xlane.xlu0 %161
    %v163 = vsel %vm81, %v149, 0.0
    %164 = vadd.xlane.f32.xlu0 %v163
    %v165 = vpop.xlane.xlu0 %164
    %v166 = vsel %vm81, %v150, 0.0
    %167 = vadd.xlane.f32.xlu0 %v166
    %v168 = vpop.xlane.xlu0 %167
    %v169 = vsel %vm81, %v151, 0.0
    %170 = vadd.xlane.f32.xlu0 %v169
    %v171 = vpop.xlane.xlu0 %170
    %v172 = vsel %vm81, %v152, 0.0
    %173 = vadd.xlane.f32.xlu0 %v172
    %v174 = vpop.xlane.xlu0 %173
    %v175 = vsel %vm81, %v153, 0.0
    %176 = vadd.xlane.f32.xlu0 %v175
    %v177 = vpop.xlane.xlu0 %176
    %v178 = vmul.f32 %v156, %v85
    %v179 = vmul.f32 %v159, %v85
    %v180 = vmul.f32 %v162, %v85
    %v181 = vmul.f32 %v165, %v85
    %v182 = vmul.f32 %v168, %v85
    %v183 = vmul.f32 %v171, %v85
    %v184 = vmul.f32 %v174, %v85
    %v185 = vmul.f32 %v177, %v85
    %v186 = vadd.f32 %v178, 1e-05
    %v187 = vadd.f32 %v179, 1e-05
    %v188 = vadd.f32 %v180, 1e-05
    %v189 = vadd.f32 %v181, 1e-05
    %v190 = vadd.f32 %v182, 1e-05
    %v191 = vadd.f32 %v183, 1e-05
    %v192 = vadd.f32 %v184, 1e-05
    %v193 = vadd.f32 %v185, 1e-05
    %v194 = vrsqrt.pop %v186
    %v195 = vrsqrt.pop %v187
    %v196 = vrsqrt.pop %v188
    %v197 = vrsqrt.pop %v189
    %v198 = vrsqrt.pop %v190
    %v199 = vrsqrt.pop %v191
    %v200 = vrsqrt.pop %v192
    %v201 = vrsqrt.pop %v193
    %v202 = vmul.f32 %v138, %v194
    %v203 = vmul.f32 %v139, %v195
    %v204 = vmul.f32 %v140, %v196
    %v205 = vmul.f32 %v141, %v197
    %v206 = vmul.f32 %v142, %v198
    %v207 = vmul.f32 %v143, %v199
    %v208 = vmul.f32 %v144, %v200
    %v209 = vmul.f32 %v145, %v201
    %v210 = vmul.f32 %v202, %v99
    %v211 = vmul.f32 %v203, %v99
    %v212 = vmul.f32 %v204, %v99
    %v213 = vmul.f32 %v205, %v99
    %v214 = vmul.f32 %v206, %v99
    %v215 = vmul.f32 %v207, %v99
    %v216 = vmul.f32 %v208, %v99
    %v217 = vmul.f32 %v209, %v99
    %v218 = vadd.f32 %v210, %v104
    %v219 = vadd.f32 %v211, %v104
    %v220 = vadd.f32 %v212, %v104
    %v221 = vadd.f32 %v213, %v104
    %v222 = vadd.f32 %v214, %v104
    %v223 = vadd.f32 %v215, %v104
    %v224 = vadd.f32 %v216, %v104
    %v225 = vadd.f32 %v217, %v104
    %v226 = vpack.c.bf16 %v105, %v105
    %v231 = vunpack.c.l.b16 %v64
    %v232 = vunpack.c.l.b16 %v65
    %v233 = vunpack.c.l.b16 %v66
    %v234 = vunpack.c.l.b16 %v67
    %v235 = vpack.c.b16 %v232, %v231
    %v236 = vpack.c.b16 %v234, %v233
    %v240 = vsel %vm81, %v226, 0
    %242 = vmatprep.subr.bf16.mxu0 0
    %243 = vmatpush1.bf16.msra.mxu0 0
    %244 = vmatprep.subr.bf16.mxu0 0
    %245 = vmatpush1.bf16.msra.mxu0 0
    %246 = vmatprep.subr.bf16.mxu0 0
    %247 = vmatpush1.bf16.msra.mxu0 0
    %248 = vmatprep.subr.bf16.mxu0 0
    %249 = vmatpush1.bf16.msra.mxu0 0
    %250 = vmatprep.subr.bf16.mxu0 0
    %251 = vmatpush1.bf16.msra.mxu0 0
    %252 = vmatprep.subr.bf16.mxu0 0
    %253 = vmatpush1.bf16.msra.mxu0 0
    %254 = vmatprep.subr.bf16.mxu0 0
    %255 = vmatpush1.bf16.msra.mxu0 %v236
    %256 = vmatprep.subr.bf16.mxu0 0
    %257 = vmatpush1.bf16.msra.mxu0 %v235
    %258 = vmatprep.subr.bf16.mxu0 0
    %259 = vmatpush2.bf16.msra.mxu0 0
    %260 = vmatprep.subr.bf16.mxu0 0
    %261 = vmatpush2.bf16.msra.mxu0 0
    %262 = vmatprep.subr.bf16.mxu0 0
    %263 = vmatpush2.bf16.msra.mxu0 0
    %264 = vmatprep.subr.bf16.mxu0 0
    %265 = vmatpush2.bf16.msra.mxu0 0
    %266 = vmatprep.subr.bf16.mxu0 0
    %267 = vmatpush2.bf16.msra.mxu0 0
    %268 = vmatprep.subr.bf16.mxu0 0
    %269 = vmatpush2.bf16.msra.mxu0 0
    %270 = vmatprep.subr.bf16.mxu0 0
    %271 = vmatpush2.bf16.msra.mxu0 0
    %272 = vmatprep.subr.bf16.mxu0 0
    %273 = vmatpush2.bf16.msra.mxu0 0
    %274 = vmatprep.mubr.bf16.mxu0 0
    %275 = vmatmul.mubr.bf16.gmra.mxu0 %v240
    %v276 = vpop.f32.mrf.mxu0
    %v277 = vadd.f32 0.0, %v276
    %v278 = vpop.f32.mrf.mxu0
    %v279 = vpop.f32.mrf.mxu0
    %v280 = vpop.f32.mrf.mxu0
    %281 = vdwg.mxu0
    %v282 = vpack.c.bf16 %v219, %v218
    %v283 = vpack.c.bf16 %v221, %v220
    %v284 = vpack.c.bf16 %v223, %v222
    %v285 = vpack.c.bf16 %v225, %v224
    %v287 = vsel %vm81, %v282, 0
    %v290 = vsel %vm81, %v283, 0
    %v293 = vsel %vm81, %v284, 0
    %v296 = vsel %vm81, %v285, 0
    %298 = vmatprep.subr.bf16.mxu0 0
    %299 = vmatpush1.bf16.msra.mxu0 0
    %300 = vmatprep.subr.bf16.mxu0 0
    %301 = vmatpush1.bf16.msra.mxu0 0
    %302 = vmatprep.subr.bf16.mxu0 0
    %303 = vmatpush1.bf16.msra.mxu0 0
    %304 = vmatprep.subr.bf16.mxu0 0
    %305 = vmatpush1.bf16.msra.mxu0 0
    %306 = vmatprep.subr.bf16.mxu0 0
    %307 = vmatpush1.bf16.msra.mxu0 0
    %308 = vmatprep.subr.bf16.mxu0 0
    %309 = vmatpush1.bf16.msra.mxu0 0
    %310 = vmatprep.subr.bf16.mxu0 0
    %311 = vmatpush1.bf16.msra.mxu0 %v236
    %312 = vmatprep.subr.bf16.mxu0 0
    %313 = vmatpush1.bf16.msra.mxu0 %v235
    %314 = vmatprep.subr.bf16.mxu0 0
    %315 = vmatpush2.bf16.msra.mxu0 0
    %316 = vmatprep.subr.bf16.mxu0 0
    %317 = vmatpush2.bf16.msra.mxu0 0
    %318 = vmatprep.subr.bf16.mxu0 0
    %319 = vmatpush2.bf16.msra.mxu0 0
    %320 = vmatprep.subr.bf16.mxu0 0
    %321 = vmatpush2.bf16.msra.mxu0 0
    %322 = vmatprep.subr.bf16.mxu0 0
    %323 = vmatpush2.bf16.msra.mxu0 0
    %324 = vmatprep.subr.bf16.mxu0 0
    %325 = vmatpush2.bf16.msra.mxu0 0
    %326 = vmatprep.subr.bf16.mxu0 0
    %327 = vmatpush2.bf16.msra.mxu0 0
    %328 = vmatprep.subr.bf16.mxu0 0
    %329 = vmatpush2.bf16.msra.mxu0 0
    %330 = vmatprep.mubr.bf16.mxu0 0
    %331 = vmatmul.mubr.bf16.gmra.mxu0 %v287
    %v332 = vpop.f32.mrf.mxu0
    %v333 = vadd.f32 0.0, %v332
    %v334 = vpop.f32.mrf.mxu0
    %v335 = vpop.f32.mrf.mxu0
    %v336 = vadd.f32 0.0, %v335
    %v337 = vpop.f32.mrf.mxu0
    %338 = vmatprep.mubr.bf16.mxu0 0
    %339 = vmatmul.mubr.bf16.gmra.mxu0 %v290
    %v340 = vpop.f32.mrf.mxu0
    %v341 = vadd.f32 0.0, %v340
    %v342 = vpop.f32.mrf.mxu0
    %v343 = vpop.f32.mrf.mxu0
    %v344 = vadd.f32 0.0, %v343
    %v345 = vpop.f32.mrf.mxu0
    %346 = vmatprep.mubr.bf16.mxu0 0
    %347 = vmatmul.mubr.bf16.gmra.mxu0 %v293
    %v348 = vpop.f32.mrf.mxu0
    %v349 = vadd.f32 0.0, %v348
    %v350 = vpop.f32.mrf.mxu0
    %v351 = vpop.f32.mrf.mxu0
    %v352 = vadd.f32 0.0, %v351
    %v353 = vpop.f32.mrf.mxu0
    %354 = vmatprep.mubr.bf16.mxu0 0
    %355 = vmatmul.mubr.bf16.gmra.mxu0 %v296
    %v356 = vpop.f32.mrf.mxu0
    %v357 = vadd.f32 0.0, %v356
    %v358 = vpop.f32.mrf.mxu0
    %v359 = vpop.f32.mrf.mxu0
    %v360 = vadd.f32 0.0, %v359
    %v361 = vpop.f32.mrf.mxu0
    %362 = vdwg.mxu0
    %v364 = vcombine.high %v277, %v277
    %v366 = vunpack.c.l.s4 1966171168
    %v367 = vunpack.c.0.s8 %v366
    %v368 = vlaneseq
    %v369 = vshrl.u32 %v368, 7
    %v370 = vsub.s32 %v367, %v369
    %v371 = vrot.slane %v277, %v370
    %v373 = vunpack.c.l.s4 1966171168
    %v374 = vunpack.c.0.s8 %v373
    %v375 = vlaneseq
    %v376 = vshrl.u32 %v375, 7
    %v377 = vsub.s32 %v374, %v376
    %v378 = vrot.slane %v364, %v377
    %v379 = vcombine.high %v371, %v371
    %v380 = vcombine.high %v378, %v378
    %v382 = vunpack.c.l.s4 1966171168
    %v383 = vunpack.c.0.s8 %v382
    %v384 = vlaneseq
    %v385 = vshrl.u32 %v384, 7
    %v386 = vsub.s32 %v383, %v385
    %v387 = vrot.slane %v371, %v386
    %v389 = vunpack.c.l.s4 1966171168
    %v390 = vunpack.c.0.s8 %v389
    %v391 = vlaneseq
    %v392 = vshrl.u32 %v391, 7
    %v393 = vsub.s32 %v390, %v392
    %v394 = vrot.slane %v378, %v393
    %v396 = vunpack.c.l.s4 1966171168
    %v397 = vunpack.c.0.s8 %v396
    %v398 = vlaneseq
    %v399 = vshrl.u32 %v398, 7
    %v400 = vsub.s32 %v397, %v399
    %v401 = vrot.slane %v379, %v400
    %v403 = vunpack.c.l.s4 1966171168
    %v404 = vunpack.c.0.s8 %v403
    %v405 = vlaneseq
    %v406 = vshrl.u32 %v405, 7
    %v407 = vsub.s32 %v404, %v406
    %v408 = vrot.slane %v380, %v407
    %v409 = vcombine.high %v387, %v387
    %v410 = vcombine.high %v394, %v394
    %v411 = vcombine.high %v401, %v401
    %v412 = vcombine.high %v408, %v408
    %v413 = vlaneseq
    %v414 = vshrl.u32 %v413, 7
    %v415 = vsub.s32 0, %v414
    %v416 = vrot.slane %v387, %v415
    %v417 = vlaneseq
    %v418 = vshrl.u32 %v417, 7
    %v419 = vsub.s32 0, %v418
    %v420 = vrot.slane %v401, %v419
    %v421 = vlaneseq
    %v422 = vshrl.u32 %v421, 7
    %v423 = vsub.s32 0, %v422
    %v424 = vrot.slane %v409, %v423
    %v425 = vlaneseq
    %v426 = vshrl.u32 %v425, 7
    %v427 = vsub.s32 0, %v426
    %v428 = vrot.slane %v411, %v427
    %v429 = vlaneseq
    %v430 = vshrl.u32 %v429, 7
    %v431 = vsub.s32 0, %v430
    %v432 = vrot.slane %v394, %v431
    %v433 = vlaneseq
    %v434 = vshrl.u32 %v433, 7
    %v435 = vsub.s32 0, %v434
    %v436 = vrot.slane %v408, %v435
    %v437 = vlaneseq
    %v438 = vshrl.u32 %v437, 7
    %v439 = vsub.s32 0, %v438
    %v440 = vrot.slane %v410, %v439
    %v441 = vlaneseq
    %v442 = vshrl.u32 %v441, 7
    %v443 = vsub.s32 0, %v442
    %v444 = vrot.slane %v412, %v443
    %461 = vrot.lane.b32.xlu0 %v333, 64
    %v462 = vpop.permute.xlu0 %461
    %463 = vrot.lane.b32.xlu0 %v336, 64
    %v464 = vpop.permute.xlu0 %463
    %465 = vrot.lane.b32.xlu0 %v341, 64
    %v466 = vpop.permute.xlu0 %465
    %467 = vrot.lane.b32.xlu0 %v344, 64
    %v468 = vpop.permute.xlu0 %467
    %469 = vrot.lane.b32.xlu0 %v349, 64
    %v470 = vpop.permute.xlu0 %469
    %471 = vrot.lane.b32.xlu0 %v352, 64
    %v472 = vpop.permute.xlu0 %471
    %473 = vrot.lane.b32.xlu0 %v357, 64
    %v474 = vpop.permute.xlu0 %473
    %475 = vrot.lane.b32.xlu0 %v360, 64
    %v476 = vpop.permute.xlu0 %475
    %v485 = vmul.f32 %v416, %v462
    %v486 = vmul.f32 %v420, %v464
    %v487 = vmul.f32 %v424, %v466
    %v488 = vmul.f32 %v428, %v468
    %v489 = vmul.f32 %v432, %v470
    %v490 = vmul.f32 %v436, %v472
    %v491 = vmul.f32 %v440, %v474
    %v492 = vmul.f32 %v444, %v476
    %501 = vrot.lane.b32.xlu0 %v485, 64
    %v502 = vpop.permute.xlu0 %501
    %503 = vrot.lane.b32.xlu0 %v486, 64
    %v504 = vpop.permute.xlu0 %503
    %505 = vrot.lane.b32.xlu0 %v487, 64
    %v506 = vpop.permute.xlu0 %505
    %507 = vrot.lane.b32.xlu0 %v488, 64
    %v508 = vpop.permute.xlu0 %507
    %509 = vrot.lane.b32.xlu0 %v489, 64
    %v510 = vpop.permute.xlu0 %509
    %511 = vrot.lane.b32.xlu0 %v490, 64
    %v512 = vpop.permute.xlu0 %511
    %513 = vrot.lane.b32.xlu0 %v491, 64
    %v514 = vpop.permute.xlu0 %513
    %515 = vrot.lane.b32.xlu0 %v492, 64
    %v516 = vpop.permute.xlu0 %515
    %v517 = vsel %vm81, %v502, 0
    %v519 = vsel %vm81, %v504, 0
    %v521 = vsel %vm81, %v506, 0
    %v523 = vsel %vm81, %v508, 0
    %v525 = vsel %vm81, %v510, 0
    %v527 = vsel %vm81, %v512, 0
    %v529 = vsel %vm81, %v514, 0
    %v531 = vsel %vm81, %v516, 0
    %533 = vmatprep.subr.mxu0 0.0
    %534 = vmatpush1.msra.mxu0 0.0
    %535 = vmatprep.subr.mxu0 0.0
    %536 = vmatpush1.msra.mxu0 0.0
    %537 = vmatprep.subr.mxu0 0.0
    %538 = vmatpush1.msra.mxu0 0.0
    %539 = vmatprep.subr.mxu0 0.0
    %540 = vmatpush1.msra.mxu0 0.0
    %541 = vmatprep.subr.mxu0 0.0
    %542 = vmatpush1.msra.mxu0 0.0
    %543 = vmatprep.subr.mxu0 0.0
    %544 = vmatpush1.msra.mxu0 0.0
    %545 = vmatprep.subr.mxu0 0.0
    %546 = vmatpush1.msra.mxu0 0.0
    %547 = vmatprep.subr.mxu0 0.0
    %548 = vmatpush1.msra.mxu0 0.0
    %549 = vmatprep.subr.mxu0 0.0
    %550 = vmatpush1.msra.mxu0 0.0
    %551 = vmatprep.subr.mxu0 0.0
    %552 = vmatpush1.msra.mxu0 0.0
    %553 = vmatprep.subr.mxu0 0.0
    %554 = vmatpush1.msra.mxu0 0.0
    %555 = vmatprep.subr.mxu0 0.0
    %556 = vmatpush1.msra.mxu0 0.0
    %557 = vmatprep.subr.mxu0 0.0
    %558 = vmatpush1.msra.mxu0 %v71
    %559 = vmatprep.subr.mxu0 0.0
    %560 = vmatpush1.msra.mxu0 %v70
    %561 = vmatprep.subr.mxu0 0.0
    %562 = vmatpush1.msra.mxu0 %v69
    %563 = vmatprep.subr.mxu0 0.0
    %564 = vmatpush1.msra.mxu0 %v68
    %565 = vmatprep.subr.mxu0 0.0
    %566 = vmatpush2.msra.mxu0 0.0
    %567 = vmatprep.subr.mxu0 0.0
    %568 = vmatpush2.msra.mxu0 0.0
    %569 = vmatprep.subr.mxu0 0.0
    %570 = vmatpush2.msra.mxu0 0.0
    %571 = vmatprep.subr.mxu0 0.0
    %572 = vmatpush2.msra.mxu0 0.0
    %573 = vmatprep.subr.mxu0 0.0
    %574 = vmatpush2.msra.mxu0 0.0
    %575 = vmatprep.subr.mxu0 0.0
    %576 = vmatpush2.msra.mxu0 0.0
    %577 = vmatprep.subr.mxu0 0.0
    %578 = vmatpush2.msra.mxu0 0.0
    %579 = vmatprep.subr.mxu0 0.0
    %580 = vmatpush2.msra.mxu0 0.0
    %581 = vmatprep.subr.mxu0 0.0
    %582 = vmatpush2.msra.mxu0 0.0
    %583 = vmatprep.subr.mxu0 0.0
    %584 = vmatpush2.msra.mxu0 0.0
    %585 = vmatprep.subr.mxu0 0.0
    %586 = vmatpush2.msra.mxu0 0.0
    %587 = vmatprep.subr.mxu0 0.0
    %588 = vmatpush2.msra.mxu0 0.0
    %589 = vmatprep.subr.mxu0 0.0
    %590 = vmatpush2.msra.mxu0 0.0
    %591 = vmatprep.subr.mxu0 0.0
    %592 = vmatpush2.msra.mxu0 0.0
    %593 = vmatprep.subr.mxu0 0.0
    %594 = vmatpush2.msra.mxu0 0.0
    %595 = vmatprep.subr.mxu0 0.0
    %596 = vmatpush2.msra.mxu0 0.0
    %597 = vmatprep.mubr.f32.mxu0 0.0
    %598 = vmatmul.mubr.f32.gmra.mxu0 %v517
    %v599 = vpop.f32.mrf.mxu0
    %v600 = vadd.f32 0.0, %v599
    %v601 = vpop.f32.mrf.mxu0
    %602 = vmatprep.mubr.f32.mxu0 0.0
    %603 = vmatmul.mubr.f32.gmra.mxu0 %v519
    %v604 = vpop.f32.mrf.mxu0
    %v605 = vadd.f32 0.0, %v604
    %v606 = vpop.f32.mrf.mxu0
    %607 = vmatprep.mubr.f32.mxu0 0.0
    %608 = vmatmul.mubr.f32.gmra.mxu0 %v521
    %v609 = vpop.f32.mrf.mxu0
    %v610 = vadd.f32 0.0, %v609
    %v611 = vpop.f32.mrf.mxu0
    %612 = vmatprep.mubr.f32.mxu0 0.0
    %613 = vmatmul.mubr.f32.gmra.mxu0 %v523
    %v614 = vpop.f32.mrf.mxu0
    %v615 = vadd.f32 0.0, %v614
    %v616 = vpop.f32.mrf.mxu0
    %617 = vmatprep.mubr.f32.mxu0 0.0
    %618 = vmatmul.mubr.f32.gmra.mxu0 %v525
    %v619 = vpop.f32.mrf.mxu0
    %v620 = vadd.f32 0.0, %v619
    %v621 = vpop.f32.mrf.mxu0
    %622 = vmatprep.mubr.f32.mxu0 0.0
    %623 = vmatmul.mubr.f32.gmra.mxu0 %v527
    %v624 = vpop.f32.mrf.mxu0
    %v625 = vadd.f32 0.0, %v624
    %v626 = vpop.f32.mrf.mxu0
    %627 = vmatprep.mubr.f32.mxu0 0.0
    %628 = vmatmul.mubr.f32.gmra.mxu0 %v529
    %v629 = vpop.f32.mrf.mxu0
    %v630 = vadd.f32 0.0, %v629
    %v631 = vpop.f32.mrf.mxu0
    %632 = vmatprep.mubr.f32.mxu0 0.0
    %633 = vmatmul.mubr.f32.gmra.mxu0 %v531
    %v634 = vpop.f32.mrf.mxu0
    %v635 = vadd.f32 0.0, %v634
    %v636 = vpop.f32.mrf.mxu0
    %637 = vdwg.mxu0
    %638 = vrot.lane.b32.xlu0 %v277, 64
    %v639 = vpop.permute.xlu0 %638
    %v641 = vmul.f32 %v277, %v639
    %643 = vrot.lane.b32.xlu0 %v641, 64
    %v644 = vpop.permute.xlu0 %643
    %v645 = vsel %vm81, %v644, 0
    %647 = vmatprep.subr.mxu0 0.0
    %648 = vmatpush1.msra.mxu0 0.0
    %649 = vmatprep.subr.mxu0 0.0
    %650 = vmatpush1.msra.mxu0 0.0
    %651 = vmatprep.subr.mxu0 0.0
    %652 = vmatpush1.msra.mxu0 0.0
    %653 = vmatprep.subr.mxu0 0.0
    %654 = vmatpush1.msra.mxu0 0.0
    %655 = vmatprep.subr.mxu0 0.0
    %656 = vmatpush1.msra.mxu0 0.0
    %657 = vmatprep.subr.mxu0 0.0
    %658 = vmatpush1.msra.mxu0 0.0
    %659 = vmatprep.subr.mxu0 0.0
    %660 = vmatpush1.msra.mxu0 0.0
    %661 = vmatprep.subr.mxu0 0.0
    %662 = vmatpush1.msra.mxu0 0.0
    %663 = vmatprep.subr.mxu0 0.0
    %664 = vmatpush1.msra.mxu0 0.0
    %665 = vmatprep.subr.mxu0 0.0
    %666 = vmatpush1.msra.mxu0 0.0
    %667 = vmatprep.subr.mxu0 0.0
    %668 = vmatpush1.msra.mxu0 0.0
    %669 = vmatprep.subr.mxu0 0.0
    %670 = vmatpush1.msra.mxu0 0.0
    %671 = vmatprep.subr.mxu0 0.0
    %672 = vmatpush1.msra.mxu0 %v71
    %673 = vmatprep.subr.mxu0 0.0
    %674 = vmatpush1.msra.mxu0 %v70
    %675 = vmatprep.subr.mxu0 0.0
    %676 = vmatpush1.msra.mxu0 %v69
    %677 = vmatprep.subr.mxu0 0.0
    %678 = vmatpush1.msra.mxu0 %v68
    %679 = vmatprep.subr.mxu0 0.0
    %680 = vmatpush2.msra.mxu0 0.0
    %681 = vmatprep.subr.mxu0 0.0
    %682 = vmatpush2.msra.mxu0 0.0
    %683 = vmatprep.subr.mxu0 0.0
    %684 = vmatpush2.msra.mxu0 0.0
    %685 = vmatprep.subr.mxu0 0.0
    %686 = vmatpush2.msra.mxu0 0.0
    %687 = vmatprep.subr.mxu0 0.0
    %688 = vmatpush2.msra.mxu0 0.0
    %689 = vmatprep.subr.mxu0 0.0
    %690 = vmatpush2.msra.mxu0 0.0
    %691 = vmatprep.subr.mxu0 0.0
    %692 = vmatpush2.msra.mxu0 0.0
    %693 = vmatprep.subr.mxu0 0.0
    %694 = vmatpush2.msra.mxu0 0.0
    %695 = vmatprep.subr.mxu0 0.0
    %696 = vmatpush2.msra.mxu0 0.0
    %697 = vmatprep.subr.mxu0 0.0
    %698 = vmatpush2.msra.mxu0 0.0
    %699 = vmatprep.subr.mxu0 0.0
    %700 = vmatpush2.msra.mxu0 0.0
    %701 = vmatprep.subr.mxu0 0.0
    %702 = vmatpush2.msra.mxu0 0.0
    %703 = vmatprep.subr.mxu0 0.0
    %704 = vmatpush2.msra.mxu0 0.0
    %705 = vmatprep.subr.mxu0 0.0
    %706 = vmatpush2.msra.mxu0 0.0
    %707 = vmatprep.subr.mxu0 0.0
    %708 = vmatpush2.msra.mxu0 0.0
    %709 = vmatprep.subr.mxu0 0.0
    %710 = vmatpush2.msra.mxu0 0.0
    %711 = vmatprep.mubr.f32.mxu0 0.0
    %712 = vmatmul.mubr.f32.gmra.mxu0 %v645
    %v713 = vpop.f32.mrf.mxu0
    %v714 = vadd.f32 0.0, %v713
    %v715 = vpop.f32.mrf.mxu0
    %716 = vdwg.mxu0
    %v717 = vsel %vm81, %v600, -inf
    %v718 = vrot.slane %v717, 4
    %v719 = vmax.f32 %v717, %v718
    %v720 = vrot.slane %v719, 2
    %v721 = vmax.f32 %v719, %v720
    %v722 = vrot.slane %v721, 1
    %v723 = vmax.f32 %v721, %v722
    %v724 = vsel %vm81, %v605, -inf
    %v725 = vrot.slane %v724, 4
    %v726 = vmax.f32 %v724, %v725
    %v727 = vrot.slane %v726, 2
    %v728 = vmax.f32 %v726, %v727
    %v729 = vrot.slane %v728, 1
    %v730 = vmax.f32 %v728, %v729
    %v731 = vsel %vm81, %v610, -inf
    %v732 = vrot.slane %v731, 4
    %v733 = vmax.f32 %v731, %v732
    %v734 = vrot.slane %v733, 2
    %v735 = vmax.f32 %v733, %v734
    %v736 = vrot.slane %v735, 1
    %v737 = vmax.f32 %v735, %v736
    %v738 = vsel %vm81, %v615, -inf
    %v739 = vrot.slane %v738, 4
    %v740 = vmax.f32 %v738, %v739
    %v741 = vrot.slane %v740, 2
    %v742 = vmax.f32 %v740, %v741
    %v743 = vrot.slane %v742, 1
    %v744 = vmax.f32 %v742, %v743
    %v745 = vsel %vm81, %v620, -inf
    %v746 = vrot.slane %v745, 4
    %v747 = vmax.f32 %v745, %v746
    %v748 = vrot.slane %v747, 2
    %v749 = vmax.f32 %v747, %v748
    %v750 = vrot.slane %v749, 1
    %v751 = vmax.f32 %v749, %v750
    %v752 = vsel %vm81, %v625, -inf
    %v753 = vrot.slane %v752, 4
    %v754 = vmax.f32 %v752, %v753
    %v755 = vrot.slane %v754, 2
    %v756 = vmax.f32 %v754, %v755
    %v757 = vrot.slane %v756, 1
    %v758 = vmax.f32 %v756, %v757
    %v759 = vsel %vm81, %v630, -inf
    %v760 = vrot.slane %v759, 4
    %v761 = vmax.f32 %v759, %v760
    %v762 = vrot.slane %v761, 2
    %v763 = vmax.f32 %v761, %v762
    %v764 = vrot.slane %v763, 1
    %v765 = vmax.f32 %v763, %v764
    %v766 = vsel %vm81, %v635, -inf
    %v767 = vrot.slane %v766, 4
    %v768 = vmax.f32 %v766, %v767
    %v769 = vrot.slane %v768, 2
    %v770 = vmax.f32 %v768, %v769
    %v771 = vrot.slane %v770, 1
    %v772 = vmax.f32 %v770, %v771
    %v774 = vrot.slane %v714, 1
    %v775 = vrot.slane %v714, 2
    %v776 = vrot.slane %v714, 3
    %v777 = vrot.slane %v714, 4
    %v778 = vrot.slane %v714, 5
    %v779 = vrot.slane %v714, 6
    %v780 = vrot.slane %v714, 7
    %v789 = vmax.f32 %v723, %v714
    %v790 = vmax.f32 %v730, %v774
    %v791 = vmax.f32 %v737, %v775
    %v792 = vmax.f32 %v744, %v776
    %v793 = vmax.f32 %v751, %v777
    %v794 = vmax.f32 %v758, %v778
    %v795 = vmax.f32 %v765, %v779
    %v796 = vmax.f32 %v772, %v780
    %v797 = vlaneseq
    %v798 = vshrl.u32 %v797, 7
    %v799 = vsub.s32 0, %v798
    %v800 = vrot.slane %v789, %v799
    %v801 = vlaneseq
    %v802 = vshrl.u32 %v801, 7
    %v803 = vsub.s32 0, %v802
    %v804 = vrot.slane %v790, %v803
    %v805 = vlaneseq
    %v806 = vshrl.u32 %v805, 7
    %v807 = vsub.s32 0, %v806
    %v808 = vrot.slane %v791, %v807
    %v809 = vlaneseq
    %v810 = vshrl.u32 %v809, 7
    %v811 = vsub.s32 0, %v810
    %v812 = vrot.slane %v792, %v811
    %v813 = vlaneseq
    %v814 = vshrl.u32 %v813, 7
    %v815 = vsub.s32 0, %v814
    %v816 = vrot.slane %v793, %v815
    %v817 = vlaneseq
    %v818 = vshrl.u32 %v817, 7
    %v819 = vsub.s32 0, %v818
    %v820 = vrot.slane %v794, %v819
    %v821 = vlaneseq
    %v822 = vshrl.u32 %v821, 7
    %v823 = vsub.s32 0, %v822
    %v824 = vrot.slane %v795, %v823
    %v825 = vlaneseq
    %v826 = vshrl.u32 %v825, 7
    %v827 = vsub.s32 0, %v826
    %v828 = vrot.slane %v796, %v827
    %v829 = vsub.f32 %v600, %v800
    %v830 = vsub.f32 %v605, %v804
    %v831 = vsub.f32 %v610, %v808
    %v832 = vsub.f32 %v615, %v812
    %v833 = vsub.f32 %v620, %v816
    %v834 = vsub.f32 %v625, %v820
    %v835 = vsub.f32 %v630, %v824
    %v836 = vsub.f32 %v635, %v828
    %v837 = vmul.f32 %v829, 1.442695
    %v838 = vpow.pop %v837
    %v839 = vmul.f32 %v830, 1.442695
    %v840 = vpow.pop %v839
    %v841 = vmul.f32 %v831, 1.442695
    %v842 = vpow.pop %v841
    %v843 = vmul.f32 %v832, 1.442695
    %v844 = vpow.pop %v843
    %v845 = vmul.f32 %v833, 1.442695
    %v846 = vpow.pop %v845
    %v847 = vmul.f32 %v834, 1.442695
    %v848 = vpow.pop %v847
    %v849 = vmul.f32 %v835, 1.442695
    %v850 = vpow.pop %v849
    %v851 = vmul.f32 %v836, 1.442695
    %v852 = vpow.pop %v851
    %v861 = vrot.slane %v790, 7
    %vm862 = vcmask 1041409
    %v863 = vsel %vm862, %v861, %v789
    %v864 = vrot.slane %v791, 6
    %vm865 = vcmask 1042434
    %v866 = vsel %vm865, %v864, %v863
    %v867 = vrot.slane %v792, 5
    %vm868 = vcmask 1043459
    %v869 = vsel %vm868, %v867, %v866
    %v870 = vrot.slane %v793, 4
    %vm871 = vcmask 1044484
    %v872 = vsel %vm871, %v870, %v869
    %v873 = vrot.slane %v794, 3
    %vm874 = vcmask 1045509
    %v875 = vsel %vm874, %v873, %v872
    %v876 = vrot.slane %v795, 2
    %vm877 = vcmask 1046534
    %v878 = vsel %vm877, %v876, %v875
    %v879 = vrot.slane %v796, 1
    %vm880 = vcmask 1047559
    %v881 = vsel %vm880, %v879, %v878
    %v883 = vsub.f32 %v714, %v881
    %v884 = vmul.f32 %v883, 1.442695
    %v885 = vpow.pop %v884
    %v886 = vsel %vm81, %v838, 0.0
    %v887 = vrot.slane %v886, 4
    %v888 = vadd.f32 %v886, %v887
    %v889 = vrot.slane %v888, 2
    %v890 = vadd.f32 %v888, %v889
    %v891 = vrot.slane %v890, 1
    %v892 = vadd.f32 %v890, %v891
    %v893 = vsel %vm81, %v840, 0.0
    %v894 = vrot.slane %v893, 4
    %v895 = vadd.f32 %v893, %v894
    %v896 = vrot.slane %v895, 2
    %v897 = vadd.f32 %v895, %v896
    %v898 = vrot.slane %v897, 1
    %v899 = vadd.f32 %v897, %v898
    %v900 = vsel %vm81, %v842, 0.0
    %v901 = vrot.slane %v900, 4
    %v902 = vadd.f32 %v900, %v901
    %v903 = vrot.slane %v902, 2
    %v904 = vadd.f32 %v902, %v903
    %v905 = vrot.slane %v904, 1
    %v906 = vadd.f32 %v904, %v905
    %v907 = vsel %vm81, %v844, 0.0
    %v908 = vrot.slane %v907, 4
    %v909 = vadd.f32 %v907, %v908
    %v910 = vrot.slane %v909, 2
    %v911 = vadd.f32 %v909, %v910
    %v912 = vrot.slane %v911, 1
    %v913 = vadd.f32 %v911, %v912
    %v914 = vsel %vm81, %v846, 0.0
    %v915 = vrot.slane %v914, 4
    %v916 = vadd.f32 %v914, %v915
    %v917 = vrot.slane %v916, 2
    %v918 = vadd.f32 %v916, %v917
    %v919 = vrot.slane %v918, 1
    %v920 = vadd.f32 %v918, %v919
    %v921 = vsel %vm81, %v848, 0.0
    %v922 = vrot.slane %v921, 4
    %v923 = vadd.f32 %v921, %v922
    %v924 = vrot.slane %v923, 2
    %v925 = vadd.f32 %v923, %v924
    %v926 = vrot.slane %v925, 1
    %v927 = vadd.f32 %v925, %v926
    %v928 = vsel %vm81, %v850, 0.0
    %v929 = vrot.slane %v928, 4
    %v930 = vadd.f32 %v928, %v929
    %v931 = vrot.slane %v930, 2
    %v932 = vadd.f32 %v930, %v931
    %v933 = vrot.slane %v932, 1
    %v934 = vadd.f32 %v932, %v933
    %v935 = vsel %vm81, %v852, 0.0
    %v936 = vrot.slane %v935, 4
    %v937 = vadd.f32 %v935, %v936
    %v938 = vrot.slane %v937, 2
    %v939 = vadd.f32 %v937, %v938
    %v940 = vrot.slane %v939, 1
    %v941 = vadd.f32 %v939, %v940
    %v943 = vrot.slane %v885, 1
    %v944 = vrot.slane %v885, 2
    %v945 = vrot.slane %v885, 3
    %v946 = vrot.slane %v885, 4
    %v947 = vrot.slane %v885, 5
    %v948 = vrot.slane %v885, 6
    %v949 = vrot.slane %v885, 7
    %v958 = vadd.f32 %v892, %v885
    %v959 = vadd.f32 %v899, %v943
    %v960 = vadd.f32 %v906, %v944
    %v961 = vadd.f32 %v913, %v945
    %v962 = vadd.f32 %v920, %v946
    %v963 = vadd.f32 %v927, %v947
    %v964 = vadd.f32 %v934, %v948
    %v965 = vadd.f32 %v941, %v949
    %966 = vrot.lane.b32.xlu0 %v333, 96
    %v967 = vpop.permute.xlu0 %966
    %968 = vrot.lane.b32.xlu0 %v336, 96
    %v969 = vpop.permute.xlu0 %968
    %970 = vrot.lane.b32.xlu0 %v341, 96
    %v971 = vpop.permute.xlu0 %970
    %972 = vrot.lane.b32.xlu0 %v344, 96
    %v973 = vpop.permute.xlu0 %972
    %974 = vrot.lane.b32.xlu0 %v349, 96
    %v975 = vpop.permute.xlu0 %974
    %976 = vrot.lane.b32.xlu0 %v352, 96
    %v977 = vpop.permute.xlu0 %976
    %978 = vrot.lane.b32.xlu0 %v357, 96
    %v979 = vpop.permute.xlu0 %978
    %980 = vrot.lane.b32.xlu0 %v360, 96
    %v981 = vpop.permute.xlu0 %980
    %v990 = vmul.f32 %v838, %v967
    %v991 = vmul.f32 %v840, %v969
    %v992 = vmul.f32 %v842, %v971
    %v993 = vmul.f32 %v844, %v973
    %v994 = vmul.f32 %v846, %v975
    %v995 = vmul.f32 %v848, %v977
    %v996 = vmul.f32 %v850, %v979
    %v997 = vmul.f32 %v852, %v981
    %v998 = vsel %vm81, %v990, 0.0
    %v999 = vrot.slane %v998, 4
    %v1000 = vadd.f32 %v998, %v999
    %v1001 = vrot.slane %v1000, 2
    %v1002 = vadd.f32 %v1000, %v1001
    %v1003 = vrot.slane %v1002, 1
    %v1004 = vadd.f32 %v1002, %v1003
    %v1005 = vsel %vm81, %v991, 0.0
    %v1006 = vrot.slane %v1005, 4
    %v1007 = vadd.f32 %v1005, %v1006
    %v1008 = vrot.slane %v1007, 2
    %v1009 = vadd.f32 %v1007, %v1008
    %v1010 = vrot.slane %v1009, 1
    %v1011 = vadd.f32 %v1009, %v1010
    %v1012 = vsel %vm81, %v992, 0.0
    %v1013 = vrot.slane %v1012, 4
    %v1014 = vadd.f32 %v1012, %v1013
    %v1015 = vrot.slane %v1014, 2
    %v1016 = vadd.f32 %v1014, %v1015
    %v1017 = vrot.slane %v1016, 1
    %v1018 = vadd.f32 %v1016, %v1017
    %v1019 = vsel %vm81, %v993, 0.0
    %v1020 = vrot.slane %v1019, 4
    %v1021 = vadd.f32 %v1019, %v1020
    %v1022 = vrot.slane %v1021, 2
    %v1023 = vadd.f32 %v1021, %v1022
    %v1024 = vrot.slane %v1023, 1
    %v1025 = vadd.f32 %v1023, %v1024
    %v1026 = vsel %vm81, %v994, 0.0
    %v1027 = vrot.slane %v1026, 4
    %v1028 = vadd.f32 %v1026, %v1027
    %v1029 = vrot.slane %v1028, 2
    %v1030 = vadd.f32 %v1028, %v1029
    %v1031 = vrot.slane %v1030, 1
    %v1032 = vadd.f32 %v1030, %v1031
    %v1033 = vsel %vm81, %v995, 0.0
    %v1034 = vrot.slane %v1033, 4
    %v1035 = vadd.f32 %v1033, %v1034
    %v1036 = vrot.slane %v1035, 2
    %v1037 = vadd.f32 %v1035, %v1036
    %v1038 = vrot.slane %v1037, 1
    %v1039 = vadd.f32 %v1037, %v1038
    %v1040 = vsel %vm81, %v996, 0.0
    %v1041 = vrot.slane %v1040, 4
    %v1042 = vadd.f32 %v1040, %v1041
    %v1043 = vrot.slane %v1042, 2
    %v1044 = vadd.f32 %v1042, %v1043
    %v1045 = vrot.slane %v1044, 1
    %v1046 = vadd.f32 %v1044, %v1045
    %v1047 = vsel %vm81, %v997, 0.0
    %v1048 = vrot.slane %v1047, 4
    %v1049 = vadd.f32 %v1047, %v1048
    %v1050 = vrot.slane %v1049, 2
    %v1051 = vadd.f32 %v1049, %v1050
    %v1052 = vrot.slane %v1051, 1
    %v1053 = vadd.f32 %v1051, %v1052
    %1054 = vrot.lane.b32.xlu0 %v277, 96
    %v1055 = vpop.permute.xlu0 %1054
    %v1057 = vmul.f32 %v885, %v1055
    %v1059 = vrot.slane %v1057, 1
    %v1060 = vrot.slane %v1057, 2
    %v1061 = vrot.slane %v1057, 3
    %v1062 = vrot.slane %v1057, 4
    %v1063 = vrot.slane %v1057, 5
    %v1064 = vrot.slane %v1057, 6
    %v1065 = vrot.slane %v1057, 7
    %v1074 = vadd.f32 %v1004, %v1057
    %v1075 = vadd.f32 %v1011, %v1059
    %v1076 = vadd.f32 %v1018, %v1060
    %v1077 = vadd.f32 %v1025, %v1061
    %v1078 = vadd.f32 %v1032, %v1062
    %v1079 = vadd.f32 %v1039, %v1063
    %v1080 = vadd.f32 %v1046, %v1064
    %v1081 = vadd.f32 %v1053, %v1065
    %v1082 = vrcp.pop %v958
    %v1083 = vmul.f32 %v1074, %v1082
    %v1084 = vrcp.pop %v959
    %v1085 = vmul.f32 %v1075, %v1084
    %v1086 = vrcp.pop %v960
    %v1087 = vmul.f32 %v1076, %v1086
    %v1088 = vrcp.pop %v961
    %v1089 = vmul.f32 %v1077, %v1088
    %v1090 = vrcp.pop %v962
    %v1091 = vmul.f32 %v1078, %v1090
    %v1092 = vrcp.pop %v963
    %v1093 = vmul.f32 %v1079, %v1092
    %v1094 = vrcp.pop %v964
    %v1095 = vmul.f32 %v1080, %v1094
    %v1096 = vrcp.pop %v965
    %v1097 = vmul.f32 %v1081, %v1096
    %v1098 = vpack.c.bf16 %v1083, %v1083
    %v1099 = vpack.c.bf16 %v1085, %v1085
    %v1100 = vpack.c.bf16 %v1087, %v1087
    %v1101 = vpack.c.bf16 %v1089, %v1089
    %v1102 = vpack.c.bf16 %v1091, %v1091
    %v1103 = vpack.c.bf16 %v1093, %v1093
    %v1104 = vpack.c.bf16 %v1095, %v1095
    %v1105 = vpack.c.bf16 %v1097, %v1097
    %v1106 = vlaneseq
    %v1107 = vshrl.u32 %v1106, 7
    %v1108 = vsub.s32 0, %v1107
    %v1109 = vrot.slane %v60, %v1108
    %v1118 = vunpack.c.l.b16 %v1098
    %v1119 = vunpack.c.l.b16 %v1099
    %v1120 = vunpack.c.l.b16 %v1100
    %v1121 = vunpack.c.l.b16 %v1101
    %v1122 = vunpack.c.l.b16 %v1102
    %v1123 = vunpack.c.l.b16 %v1103
    %v1124 = vunpack.c.l.b16 %v1104
    %v1125 = vunpack.c.l.b16 %v1105
    %v1126 = vrot.slane %v1119, 7
    %v1127 = vsel %vm862, %v1126, %v1118
    %v1128 = vrot.slane %v1120, 6
    %v1129 = vsel %vm865, %v1128, %v1127
    %v1130 = vrot.slane %v1121, 5
    %v1131 = vsel %vm868, %v1130, %v1129
    %v1132 = vrot.slane %v1122, 4
    %v1133 = vsel %vm871, %v1132, %v1131
    %v1134 = vrot.slane %v1123, 3
    %v1135 = vsel %vm874, %v1134, %v1133
    %v1136 = vrot.slane %v1124, 2
    %v1137 = vsel %vm877, %v1136, %v1135
    %v1138 = vrot.slane %v1125, 1
    %v1139 = vsel %vm880, %v1138, %v1137
    %v1140 = vpack.c.b16 %v1139, %v1139
    %1141 = vrot.lane.b32.xlu0 %v235, 32
    %v1142 = vpop.permute.xlu0 %1141
    %1143 = vrot.lane.b32.xlu0 %v236, 32
    %v1144 = vpop.permute.xlu0 %1143
    %v1148 = vsel %vm81, %v1140, 0
    %1150 = vmatprep.subr.bf16.mxu0 0
    %1151 = vmatpush1.bf16.msra.mxu0 0
    %1152 = vmatprep.subr.bf16.mxu0 0
    %1153 = vmatpush1.bf16.msra.mxu0 0
    %1154 = vmatprep.subr.bf16.mxu0 0
    %1155 = vmatpush1.bf16.msra.mxu0 0
    %1156 = vmatprep.subr.bf16.mxu0 0
    %1157 = vmatpush1.bf16.msra.mxu0 0
    %1158 = vmatprep.subr.bf16.mxu0 0
    %1159 = vmatpush1.bf16.msra.mxu0 0
    %1160 = vmatprep.subr.bf16.mxu0 0
    %1161 = vmatpush1.bf16.msra.mxu0 0
    %1162 = vmatprep.subr.bf16.mxu0 0
    %1163 = vmatpush1.bf16.msra.mxu0 %v1144
    %1164 = vmatprep.subr.bf16.mxu0 0
    %1165 = vmatpush1.bf16.msra.mxu0 %v1142
    %1166 = vmatprep.subr.bf16.mxu0 0
    %1167 = vmatpush2.bf16.msra.mxu0 0
    %1168 = vmatprep.subr.bf16.mxu0 0
    %1169 = vmatpush2.bf16.msra.mxu0 0
    %1170 = vmatprep.subr.bf16.mxu0 0
    %1171 = vmatpush2.bf16.msra.mxu0 0
    %1172 = vmatprep.subr.bf16.mxu0 0
    %1173 = vmatpush2.bf16.msra.mxu0 0
    %1174 = vmatprep.subr.bf16.mxu0 0
    %1175 = vmatpush2.bf16.msra.mxu0 0
    %1176 = vmatprep.subr.bf16.mxu0 0
    %1177 = vmatpush2.bf16.msra.mxu0 0
    %1178 = vmatprep.subr.bf16.mxu0 0
    %1179 = vmatpush2.bf16.msra.mxu0 0
    %1180 = vmatprep.subr.bf16.mxu0 0
    %1181 = vmatpush2.bf16.msra.mxu0 0
    %1182 = vmatprep.mubr.bf16.mxu0 0
    %1183 = vmatmul.mubr.bf16.gmra.mxu0 %v1148
    %v1184 = vpop.f32.mrf.mxu0
    %v1185 = vadd.f32 %v1109, %v1184
    %v1186 = vpop.f32.mrf.mxu0
    %v1187 = vpop.f32.mrf.mxu0
    %v1188 = vpop.f32.mrf.mxu0
    %1189 = vdwg.mxu0
    %v1190 = vlaneseq
    %v1191 = vshrl.u32 %v1190, 7
    %v1192 = vsub.s32 0, %v1191
    %v1193 = vrot.slane %v61, %v1192
    %v1194 = vmul.f32 %v1193, %v1185
    %v1195 = vadd.f32 %v72, %v1194
    %v1196 = vsel %vm81, %v1195, 0.0
    %1197 = vadd.xlane.f32.xlu0 %v1196
    %v1198 = vpop.xlane.xlu0 %1197
    %v1199 = vmul.f32 %v1198, %v85
    %v1200 = vsub.f32 %v1195, %v1199
    %v1201 = vmul.f32 %v1200, %v1200
    %v1202 = vsel %vm81, %v1201, 0.0
    %1203 = vadd.xlane.f32.xlu0 %v1202
    %v1204 = vpop.xlane.xlu0 %1203
    %v1205 = vmul.f32 %v1204, %v85
    %v1206 = vadd.f32 %v1205, 1e-05
    %v1207 = vrsqrt.pop %v1206
    %v1208 = vmul.f32 %v1200, %v1207
    %v1209 = vlaneseq
    %v1210 = vshrl.u32 %v1209, 7
    %v1211 = vsub.s32 0, %v1210
    %v1212 = vrot.slane %v58, %v1211
    %v1213 = vmul.f32 %v1208, %v1212
    %v1214 = vlaneseq
    %v1215 = vshrl.u32 %v1214, 7
    %v1216 = vsub.s32 0, %v1215
    %v1217 = vrot.slane %v59, %v1216
    %v1218 = vadd.f32 %v1213, %v1217
    %v1219 = vpack.c.bf16 %v1218, %v1218
    %v1220 = vld [vmem:[%s4] sm:$0x1]
    %v1222 = vlaneseq
    %v1223 = vshrl.u32 %v1222, 7
    %v1224 = vsub.s32 0, %v1223
    %v1225 = vrot.slane %v1220, %v1224
    %v1227 = vunpack.c.h.b16 %v64
    %v1228 = vunpack.c.h.b16 %v65
    %v1229 = vunpack.c.h.b16 %v66
    %v1230 = vunpack.c.h.b16 %v67
    %v1231 = vpack.c.b16 %v1228, %v1227
    %v1232 = vpack.c.b16 %v1230, %v1229
    %v1236 = vsel %vm81, %v1219, 0
    %1238 = vmatprep.subr.bf16.mxu0 0
    %1239 = vmatpush1.bf16.msra.mxu0 0
    %1240 = vmatprep.subr.bf16.mxu0 0
    %1241 = vmatpush1.bf16.msra.mxu0 0
    %1242 = vmatprep.subr.bf16.mxu0 0
    %1243 = vmatpush1.bf16.msra.mxu0 0
    %1244 = vmatprep.subr.bf16.mxu0 0
    %1245 = vmatpush1.bf16.msra.mxu0 0
    %1246 = vmatprep.subr.bf16.mxu0 0
    %1247 = vmatpush1.bf16.msra.mxu0 0
    %1248 = vmatprep.subr.bf16.mxu0 0
    %1249 = vmatpush1.bf16.msra.mxu0 0
    %1250 = vmatprep.subr.bf16.mxu0 0
    %1251 = vmatpush1.bf16.msra.mxu0 %v1232
    %1252 = vmatprep.subr.bf16.mxu0 0
    %1253 = vmatpush1.bf16.msra.mxu0 %v1231
    %1254 = vmatprep.subr.bf16.mxu0 0
    %1255 = vmatpush2.bf16.msra.mxu0 0
    %1256 = vmatprep.subr.bf16.mxu0 0
    %1257 = vmatpush2.bf16.msra.mxu0 0
    %1258 = vmatprep.subr.bf16.mxu0 0
    %1259 = vmatpush2.bf16.msra.mxu0 0
    %1260 = vmatprep.subr.bf16.mxu0 0
    %1261 = vmatpush2.bf16.msra.mxu0 0
    %1262 = vmatprep.subr.bf16.mxu0 0
    %1263 = vmatpush2.bf16.msra.mxu0 0
    %1264 = vmatprep.subr.bf16.mxu0 0
    %1265 = vmatpush2.bf16.msra.mxu0 0
    %1266 = vmatprep.subr.bf16.mxu0 0
    %1267 = vmatpush2.bf16.msra.mxu0 0
    %1268 = vmatprep.subr.bf16.mxu0 0
    %1269 = vmatpush2.bf16.msra.mxu0 0
    %1270 = vmatprep.mubr.bf16.mxu0 0
    %1271 = vmatmul.mubr.bf16.gmra.mxu0 %v1236
    %v1272 = vpop.f32.mrf.mxu0
    %v1273 = vadd.f32 %v1225, %v1272
    %v1274 = vpop.f32.mrf.mxu0
    %v1275 = vpop.f32.mrf.mxu0
    %v1276 = vpop.f32.mrf.mxu0
    %1277 = vdwg.mxu0
    %v1278 = vmul.f32 %v1273, %v1273
    %v1279 = vmul.f32 %v1273, %v1278
    %v1280 = vmul.f32 %v1279, 0.044715
    %v1281 = vadd.f32 %v1273, %v1280
    %v1282 = vmul.f32 %v1281, 0.7978846
    %v1283 = vtanh.pop %v1282
    %v1284 = vadd.f32 %v1283, 1.0
    %v1285 = vmul.f32 %v1284, 0.5
    %v1286 = vmul.f32 %v1273, %v1285
    %v1287 = vpack.c.bf16 %v1286, %v1286
    %v1288 = vld [vmem:[%s5] sm:$0xf]
    %v1289 = vld [vmem:[%s5 + $0x4] sm:$0xf]
    %v1290 = vld [vmem:[%s5 + $0x8] sm:$0xf]
    %v1291 = vld [vmem:[%s5 + $0xc] sm:$0xf]
    %v1292 = vld [vmem:[%s5 + $0x10] sm:$0xf]
    %v1293 = vld [vmem:[%s5 + $0x14] sm:$0xf]
    %v1294 = vld [vmem:[%s5 + $0x18] sm:$0xf]
    %v1295 = vld [vmem:[%s5 + $0x1c] sm:$0xf]
    %v1296 = vld [vmem:[%s5 + $0x20] sm:$0xf]
    %v1297 = vld [vmem:[%s5 + $0x24] sm:$0xf]
    %v1298 = vld [vmem:[%s5 + $0x28] sm:$0xf]
    %v1299 = vld [vmem:[%s5 + $0x2c] sm:$0xf]
    %v1300 = vld [vmem:[%s5 + $0x30] sm:$0xf]
    %v1301 = vld [vmem:[%s5 + $0x34] sm:$0xf]
    %v1302 = vld [vmem:[%s5 + $0x38] sm:$0xf]
    %v1303 = vld [vmem:[%s5 + $0x3c] sm:$0xf]
    %v1304 = vlaneseq
    %v1305 = vshrl.u32 %v1304, 7
    %v1306 = vsub.s32 0, %v1305
    %v1307 = vrot.slane %v63, %v1306
    %v1324 = vunpack.c.l.b16 %v1288
    %v1325 = vunpack.c.l.b16 %v1289
    %v1326 = vunpack.c.l.b16 %v1290
    %v1327 = vunpack.c.l.b16 %v1291
    %v1328 = vunpack.c.l.b16 %v1292
    %v1329 = vunpack.c.l.b16 %v1293
    %v1330 = vunpack.c.l.b16 %v1294
    %v1331 = vunpack.c.l.b16 %v1295
    %v1332 = vunpack.c.l.b16 %v1296
    %v1333 = vunpack.c.l.b16 %v1297
    %v1334 = vunpack.c.l.b16 %v1298
    %v1335 = vunpack.c.l.b16 %v1299
    %v1336 = vunpack.c.l.b16 %v1300
    %v1337 = vunpack.c.l.b16 %v1301
    %v1338 = vunpack.c.l.b16 %v1302
    %v1339 = vunpack.c.l.b16 %v1303
    %v1340 = vpack.c.b16 %v1325, %v1324
    %v1341 = vpack.c.b16 %v1327, %v1326
    %v1342 = vpack.c.b16 %v1329, %v1328
    %v1343 = vpack.c.b16 %v1331, %v1330
    %v1344 = vpack.c.b16 %v1333, %v1332
    %v1345 = vpack.c.b16 %v1335, %v1334
    %v1346 = vpack.c.b16 %v1337, %v1336
    %v1347 = vpack.c.b16 %v1339, %v1338
    %1356 = vmatprep.subr.bf16.mxu0 0
    %1357 = vmatpush1.bf16.msra.mxu0 %v1347
    %1358 = vmatprep.subr.bf16.mxu0 0
    %1359 = vmatpush1.bf16.msra.mxu0 %v1346
    %1360 = vmatprep.subr.bf16.mxu0 0
    %1361 = vmatpush1.bf16.msra.mxu0 %v1345
    %1362 = vmatprep.subr.bf16.mxu0 0
    %1363 = vmatpush1.bf16.msra.mxu0 %v1344
    %1364 = vmatprep.subr.bf16.mxu0 0
    %1365 = vmatpush1.bf16.msra.mxu0 %v1343
    %1366 = vmatprep.subr.bf16.mxu0 0
    %1367 = vmatpush1.bf16.msra.mxu0 %v1342
    %1368 = vmatprep.subr.bf16.mxu0 0
    %1369 = vmatpush1.bf16.msra.mxu0 %v1341
    %1370 = vmatprep.subr.bf16.mxu0 0
    %1371 = vmatpush1.bf16.msra.mxu0 %v1340
    %1372 = vmatprep.subr.bf16.mxu0 0
    %1373 = vmatpush2.bf16.msra.mxu0 0
    %1374 = vmatprep.subr.bf16.mxu0 0
    %1375 = vmatpush2.bf16.msra.mxu0 0
    %1376 = vmatprep.subr.bf16.mxu0 0
    %1377 = vmatpush2.bf16.msra.mxu0 0
    %1378 = vmatprep.subr.bf16.mxu0 0
    %1379 = vmatpush2.bf16.msra.mxu0 0
    %1380 = vmatprep.subr.bf16.mxu0 0
    %1381 = vmatpush2.bf16.msra.mxu0 0
    %1382 = vmatprep.subr.bf16.mxu0 0
    %1383 = vmatpush2.bf16.msra.mxu0 0
    %1384 = vmatprep.subr.bf16.mxu0 0
    %1385 = vmatpush2.bf16.msra.mxu0 0
    %1386 = vmatprep.subr.bf16.mxu0 0
    %1387 = vmatpush2.bf16.msra.mxu0 0
    %1388 = vmatprep.mubr.bf16.mxu0 0
    %1389 = vmatmul.mubr.bf16.gmra.mxu0 %v1287
    %v1390 = vpop.f32.mrf.mxu0
    %v1391 = vadd.f32 %v1307, %v1390
    %v1392 = vpop.f32.mrf.mxu0
    %v1393 = vpop.f32.mrf.mxu0
    %v1394 = vpop.f32.mrf.mxu0
    %1395 = vdwg.mxu0
    %v1396 = vlaneseq
    %v1397 = vshrl.u32 %v1396, 7
    %v1398 = vsub.s32 0, %v1397
    %v1399 = vrot.slane %v62, %v1398
    %v1400 = vmul.f32 %v1399, %v1391
    %v1401 = vadd.f32 %v1195, %v1400
    %1402 = vst.msk [vmem:[#allocation7] sm:$0xff] %vm81, %v1401
    // Predicated region
    $region38: #{tpu_custom_call.1} parent=1 // pred_check
      _
    $region39: #{tpu_custom_call.1} parent=1 // pred_check_branch
      %1404 = sbr.rel (0) target = $region41
    $region40: #{tpu_custom_call.1} parent=1 // pred_region
      %s1406 = ssub.s32 128, 128
      %1407 = vsyncadd [#allocation4], %s1406
      %s1409 = sshll.u32 [#allocation7], 4
      %s1410 = int_to_ptr.vmem [resolvable:$true] %s1409
      %1412 = dma.vmem_to_hbm [thread:$0]  %s1410, 128, %s7, [#allocation4]
    $region41: #{tpu_custom_call.1} parent=1 // pred_fallthru
      _
    // Predicated region
    $region42: #{tpu_custom_call.1} parent=1 // pred_check
      _
    $region43: #{tpu_custom_call.1} parent=1 // pred_check_branch
      %1414 = sbr.rel (0) target = $region45
    $region44: #{tpu_custom_call.1} parent=1 // pred_region
      %1415 = dma.done [#allocation4], 128
    $region45: #{tpu_custom_call.1} parent=1 // pred_fallthru
      _
    %1416 = vsyncpa [#allocation3], 1
    %1417 = vsyncpa [#allocation6], 1
    %1418 = vsyncpa [#allocation4], 1

</llo_original>
